<compile_context>
chip_gen: v7x
topology: tpu7x:2x2x1
jax: 0.10.0
libtpu: 0.0.40
codegen_flags: <defaults>
</compile_context>

<pallas_src>
import functools

import jax
import jax.numpy as jnp
from jax.experimental import pallas as pl
from jax.experimental.pallas import tpu as pltpu


def _attention_kernel(x_ref, wqkvT_ref, woT_ref, bo_ref, o_ref, *, embed_size, heads):
    E = embed_size
    H = heads
    D = E // H
    BN, L, _ = x_ref.shape
    R = BN * L

    # (BN, L, E) -> (BN*L, E): layout-free when L % 8 == 0 (true here, L=8).
    xf = x_ref[...].reshape(R, E)                                   # bf16 rows

    # Fused Q|K|V projection: one MXU weight push, 3E-wide result, f32 accum.
    # The 1/sqrt(E) attention scale is already folded into the Q weight block.
    qkv = jnp.dot(xf, wqkvT_ref[...], preferred_element_type=jnp.float32)   # (R, 3E)

    def heads_to_batch(t):
        # (R, E) -> (BN*H, L, D): merge heads into the batch dim so the score /
        # context matmuls are plain single-batch-dim einsums (no per-head lane
        # slices, no multi-batch-dim dot_general).
        return (t.reshape(BN, L, H, D)
                 .transpose(0, 2, 1, 3)
                 .reshape(BN * H, L, D)
                 .astype(jnp.bfloat16))

    q = heads_to_batch(qkv[:, :E])
    k = heads_to_batch(qkv[:, E:2 * E])
    v = heads_to_batch(qkv[:, 2 * E:])

    # Scores per (batch*head): bf16 operands, f32 accumulation.
    e = jnp.einsum('bqd,bkd->bqk', q, k, preferred_element_type=jnp.float32)
    e = e - jnp.max(e, axis=-1, keepdims=True)
    p = jnp.exp(e)
    attn = p / jnp.sum(p, axis=-1, keepdims=True)                   # exact divide, f32

    # Context: attn @ V (bf16 operands, f32 accumulation).
    o = jnp.einsum('bqk,bkd->bqd', attn.astype(jnp.bfloat16), v,
                   preferred_element_type=jnp.float32)              # (BN*H, L, D)

    # Recombine heads (row-major head-concat order) and apply fc_out as a
    # single depth-E matmul + f32 bias.
    o = (o.reshape(BN, H, L, D).transpose(0, 2, 1, 3).reshape(R, E)
          .astype(jnp.bfloat16))
    y = jnp.dot(o, woT_ref[...], preferred_element_type=jnp.float32)
    y = y + bo_ref[...]                                             # (1, E) f32 bias

    o_ref[...] = y.reshape(BN, L, E).astype(o_ref.dtype)


def simple_attention(x, wq, wk, wv, wo, bo, *, heads, block_n=None):
    """x: (N, L, E) float32. Weights are PyTorch-convention (out_features, in_features)."""
    N, L, E = x.shape
    H = heads
    D = E // H
    assert D * H == E, "embed_size must be divisible by heads"

    # ---- wrapper-side layout plumbing (once, in HBM) ----
    scale = 1.0 / (float(E) ** 0.5)            # module uses 1/sqrt(embed_size)
    wqkvT = jnp.concatenate([(wq * scale).T, wk.T, wv.T], axis=1).astype(jnp.bfloat16)  # (E, 3E)
    woT = wo.T.astype(jnp.bfloat16)                                                     # (E, E)
    bo2d = bo.reshape(1, E).astype(jnp.float32)
    x_bf = x.astype(jnp.bfloat16)

    # ---- per-generation VMEM budget (v7x: 64 MiB physical; v5e/v6e: 128 MiB) ----
    try:
        vmem_cap = int(getattr(pltpu.get_tpu_info(), "vmem_capacity_bytes", 64 << 20))
    except Exception:
        vmem_cap = 64 << 20
    budget = (vmem_cap * 3) // 4               # leave headroom for compiler scratch

    weight_bytes = (E * 3 * E + E * E) * 2 + E * 4                   # bf16 weights + f32 bias
    io_per_row = 2 * (L * E * 2) + 2 * (L * E * 4)                   # dbl-buffered x(bf16)+out(f32)
    act_per_row = (10 * L * E + 4 * H * L * L) * 4                   # generous f32-equiv temporaries
    per_row = io_per_row + act_per_row

    # ---- block_n: fill the budget, but keep >=2 grid steps when N >= 2 so the
    # "parallel" batch axis can shard across v7x's two TensorCores (costs only
    # one extra ~0.35us step on single-TC v5e/v6e). ----
    if block_n is None:
        avail = max(budget - 2 * weight_bytes, per_row)
        cap = max(1, min(N, avail // per_row))
        if N >= 2:
            cap = min(cap, N // 2)
        block_n = 1
        for d in range(1, N + 1):
            if N % d == 0 and d <= cap:
                block_n = d
    assert N % block_n == 0
    grid_n = N // block_n

    est = 2 * weight_bytes + block_n * per_row
    vmem_limit = int(min(max(4 * est, 32 << 20), budget))

    kernel = functools.partial(_attention_kernel, embed_size=E, heads=H)
    out_shape = jax.ShapeDtypeStruct((N, L, E), x.dtype)

    def const_spec(shape, single_buffer):
        idx = lambda n: (0,) * len(shape)
        if single_buffer:
            # Grid-invariant operand: no need to double-buffer it.
            return pl.BlockSpec(shape, idx, pipeline_mode=pl.Buffered(1))
        return pl.BlockSpec(shape, idx)

    def build(single_buffer):
        return pl.pallas_call(
            kernel,
            out_shape=out_shape,
            grid_spec=pltpu.PrefetchScalarGridSpec(
                num_scalar_prefetch=0,
                grid=(grid_n,),
                in_specs=[
                    pl.BlockSpec((block_n, L, E), lambda n: (n, 0, 0)),   # x block
                    const_spec((E, 3 * E), single_buffer),                # fused [Wq*s | Wk | Wv]^T
                    const_spec((E, E), single_buffer),                    # W_o^T
                    const_spec((1, E), single_buffer),                    # b_o
                ],
                out_specs=pl.BlockSpec((block_n, L, E), lambda n: (n, 0, 0)),
            ),
            compiler_params=pltpu.CompilerParams(
                dimension_semantics=("parallel",),
                vmem_limit_bytes=vmem_limit),
        )

    last_err = None
    for single_buffer in (True, False):
        try:
            return build(single_buffer)(x_bf, wqkvT, woT, bo2d)
        except Exception as e:  # fall back to default buffering if Buffered(1) is rejected
            last_err = e
    raise last_err


def _reference(x, wq, wk, wv, wo, bo, *, heads):
    """Plain-JAX f32 reference of the intended multi-head attention."""
    N, L, E = x.shape
    D = E // heads
    q = x @ wq.T
    k = x @ wk.T
    v = x @ wv.T
    q = q.reshape(N, L, heads, D).transpose(0, 2, 1, 3)
    k = k.reshape(N, L, heads, D).transpose(0, 2, 1, 3)
    v = v.reshape(N, L, heads, D).transpose(0, 2, 1, 3)
    energy = jnp.einsum('nhqd,nhkd->nhqk', q, k) / (E ** 0.5)
    attn = jax.nn.softmax(energy, axis=-1)
    out = jnp.einsum('nhqk,nhkd->nhqd', attn, v)
    out = out.transpose(0, 2, 1, 3).reshape(N, L, E)
    return out @ wo.T + bo


if __name__ == "__main__":
    # Small shapes consistent with the module: batch=2, seq=8, embed=32, heads=4.
    N, L, E, H = 2, 8, 32, 4

    key = jax.random.PRNGKey(0)
    kx, kq, kk, kv, ko, kb = jax.random.split(key, 6)

    x = jax.random.normal(kx, (N, L, E), dtype=jnp.float32)
    # Deterministic parameter init (PyTorch Linear weight shape: (out, in)).
    wq = jax.random.normal(kq, (E, E), dtype=jnp.float32) * 0.1
    wk = jax.random.normal(kk, (E, E), dtype=jnp.float32) * 0.1
    wv = jax.random.normal(kv, (E, E), dtype=jnp.float32) * 0.1
    wo = jax.random.normal(ko, (E, E), dtype=jnp.float32) * 0.1
    bo = jax.random.normal(kb, (E,), dtype=jnp.float32) * 0.1

    out = simple_attention(x, wq, wk, wv, wo, bo, heads=H)
    out = jax.block_until_ready(out)

    ref = _reference(x, wq, wk, wv, wo, bo, heads=H)
    assert out.shape == (N, L, E)
    # Tolerance accounts for bf16 MXU operands (f32 accumulation, f32 softmax).
    assert jnp.allclose(out, ref, atol=2e-2, rtol=2e-2), "mismatch vs. reference"

    print("KERNEL_OK")
</pallas_src>

<mosaic_0001>
module attributes {stable_mosaic.version = 11 : i64} {
  func.func @_attention_kernel(%arg0: i32, %arg1: memref<1x8x32xbf16, #tpu.memory_space<vmem>>, %arg2: memref<32x96xbf16, #tpu.memory_space<vmem>>, %arg3: memref<32x32xbf16, #tpu.memory_space<vmem>>, %arg4: memref<1x32xf32, #tpu.memory_space<vmem>>, %arg5: memref<1x8x32xf32, #tpu.memory_space<vmem>>) attributes {dimension_semantics = [#tpu.dimension_semantics<parallel>], iteration_bounds = array<i64: 2>, scalar_prefetch = 0 : i64, scratch_operands = 0 : i64, tpu.core_type = #tpu.core_type<tc>, window_params = [{transform_indices = @transform_0, window_bounds = array<i64: 1, 8, 32>}, {pipeline_mode = #tpu.pipeline_mode<synchronous>, transform_indices = @transform_1, window_bounds = array<i64: 32, 96>}, {pipeline_mode = #tpu.pipeline_mode<synchronous>, transform_indices = @transform_2, window_bounds = array<i64: 32, 32>}, {pipeline_mode = #tpu.pipeline_mode<synchronous>, transform_indices = @transform_3, window_bounds = array<i64: 1, 32>}, {transform_indices = @transform_4, window_bounds = array<i64: 1, 8, 32>}]} {
    %c0 = arith.constant 0 : index
    %c0_0 = arith.constant 0 : index
    %c0_1 = arith.constant 0 : index
    %0 = vector.load %arg1[%c0, %c0_0, %c0_1] : memref<1x8x32xbf16, #tpu.memory_space<vmem>>, vector<1x8x32xbf16>
    %1 = vector.shape_cast %0 : vector<1x8x32xbf16> to vector<8x32xbf16>
    %c0_2 = arith.constant 0 : index
    %c0_3 = arith.constant 0 : index
    %2 = vector.load %arg2[%c0_2, %c0_3] : memref<32x96xbf16, #tpu.memory_space<vmem>>, vector<32x96xbf16>
    %cst = arith.constant dense<0.000000e+00> : vector<8x96xf32>
    %3 = tpu.matmul %1, %2, %cst {dimension_numbers = #tpu.dot_dimension_numbers<[1], [0], [0], [1], [0, 0, 1, 1], [], []>} : vector<8x32xbf16>, vector<32x96xbf16>, vector<8x96xf32> -> vector<8x96xf32>
    %4 = vector.extract_strided_slice %3 {offsets = [0, 0], sizes = [8, 32], strides = [1, 1]} : vector<8x96xf32> to vector<8x32xf32>
    %5 = vector.shape_cast %4 : vector<8x32xf32> to vector<1x8x4x8xf32>
    %6 = tpu.transpose %5, [0, 2, 1, 3] : vector<1x8x4x8xf32> -> vector<1x4x8x8xf32>
    %7 = vector.shape_cast %6 : vector<1x4x8x8xf32> to vector<4x8x8xf32>
    %8 = arith.truncf %7 : vector<4x8x8xf32> to vector<4x8x8xbf16>
    %9 = vector.extract_strided_slice %3 {offsets = [0, 32], sizes = [8, 32], strides = [1, 1]} : vector<8x96xf32> to vector<8x32xf32>
    %10 = vector.shape_cast %9 : vector<8x32xf32> to vector<1x8x4x8xf32>
    %11 = tpu.transpose %10, [0, 2, 1, 3] : vector<1x8x4x8xf32> -> vector<1x4x8x8xf32>
    %12 = vector.shape_cast %11 : vector<1x4x8x8xf32> to vector<4x8x8xf32>
    %13 = arith.truncf %12 : vector<4x8x8xf32> to vector<4x8x8xbf16>
    %14 = vector.extract_strided_slice %3 {offsets = [0, 64], sizes = [8, 32], strides = [1, 1]} : vector<8x96xf32> to vector<8x32xf32>
    %15 = vector.shape_cast %14 : vector<8x32xf32> to vector<1x8x4x8xf32>
    %16 = tpu.transpose %15, [0, 2, 1, 3] : vector<1x8x4x8xf32> -> vector<1x4x8x8xf32>
    %17 = vector.shape_cast %16 : vector<1x4x8x8xf32> to vector<4x8x8xf32>
    %18 = arith.truncf %17 : vector<4x8x8xf32> to vector<4x8x8xbf16>
    "tpu.trace_start"() <{level = 10 : i32, message = "bqd,bkd->bqk"}> : () -> ()
    %cst_4 = arith.constant dense<0.000000e+00> : vector<4x8x8xf32>
    %19 = tpu.matmul %8, %13, %cst_4 {dimension_numbers = #tpu.dot_dimension_numbers<[2], [2], [1], [1], [0, 0, 0, 1, 1, 1], [0], [0]>} : vector<4x8x8xbf16>, vector<4x8x8xbf16>, vector<4x8x8xf32> -> vector<4x8x8xf32>
    "tpu.trace_stop"() : () -> ()
    %cst_5 = arith.constant dense<0xFF800000> : vector<4x8xf32>
    %20 = vector.multi_reduction <maximumf>, %19, %cst_5 [2] : vector<4x8x8xf32> to vector<4x8xf32>
    %21 = vector.shape_cast %20 : vector<4x8xf32> to vector<4x8x1xf32>
    %22 = vector.broadcast %21 : vector<4x8x1xf32> to vector<4x8x8xf32>
    %23 = arith.subf %19, %22 : vector<4x8x8xf32>
    %24 = math.exp %23 : vector<4x8x8xf32>
    %cst_6 = arith.constant dense<0.000000e+00> : vector<4x8xf32>
    %25 = vector.multi_reduction <add>, %24, %cst_6 [2] : vector<4x8x8xf32> to vector<4x8xf32>
    %26 = vector.shape_cast %25 : vector<4x8xf32> to vector<4x8x1xf32>
    %27 = vector.broadcast %26 : vector<4x8x1xf32> to vector<4x8x8xf32>
    %28 = arith.divf %24, %27 : vector<4x8x8xf32>
    %29 = arith.truncf %28 : vector<4x8x8xf32> to vector<4x8x8xbf16>
    "tpu.trace_start"() <{level = 10 : i32, message = "bqk,bkd->bqd"}> : () -> ()
    %cst_7 = arith.constant dense<0.000000e+00> : vector<4x8x8xf32>
    %30 = tpu.matmul %29, %18, %cst_7 {dimension_numbers = #tpu.dot_dimension_numbers<[2], [1], [1], [2], [0, 0, 0, 1, 1, 2], [0], [0]>} : vector<4x8x8xbf16>, vector<4x8x8xbf16>, vector<4x8x8xf32> -> vector<4x8x8xf32>
    "tpu.trace_stop"() : () -> ()
    %31 = vector.shape_cast %30 : vector<4x8x8xf32> to vector<1x4x8x8xf32>
    %32 = tpu.transpose %31, [0, 2, 1, 3] : vector<1x4x8x8xf32> -> vector<1x8x4x8xf32>
    %33 = vector.shape_cast %32 : vector<1x8x4x8xf32> to vector<8x32xf32>
    %34 = arith.truncf %33 : vector<8x32xf32> to vector<8x32xbf16>
    %c0_8 = arith.constant 0 : index
    %c0_9 = arith.constant 0 : index
    %35 = vector.load %arg3[%c0_8, %c0_9] : memref<32x32xbf16, #tpu.memory_space<vmem>>, vector<32x32xbf16>
    %cst_10 = arith.constant dense<0.000000e+00> : vector<8x32xf32>
    %36 = tpu.matmul %34, %35, %cst_10 {dimension_numbers = #tpu.dot_dimension_numbers<[1], [0], [0], [1], [0, 0, 1, 1], [], []>} : vector<8x32xbf16>, vector<32x32xbf16>, vector<8x32xf32> -> vector<8x32xf32>
    %c0_11 = arith.constant 0 : index
    %c0_12 = arith.constant 0 : index
    %37 = vector.load %arg4[%c0_11, %c0_12] : memref<1x32xf32, #tpu.memory_space<vmem>>, vector<1x32xf32>
    %38 = vector.broadcast %37 : vector<1x32xf32> to vector<8x32xf32>
    %39 = arith.addf %36, %38 : vector<8x32xf32>
    %40 = vector.shape_cast %39 : vector<8x32xf32> to vector<1x8x32xf32>
    %c0_13 = arith.constant 0 : index
    %c0_14 = arith.constant 0 : index
    %c0_15 = arith.constant 0 : index
    %41 = vector.load %arg5[%c0_13, %c0_14, %c0_15] : memref<1x8x32xf32, #tpu.memory_space<vmem>>, vector<1x8x32xf32>
    tpu.vector_store %arg5[%c0_13, %c0_14, %c0_15], %40 {strides = array<i32>} : memref<1x8x32xf32, #tpu.memory_space<vmem>>, vector<1x8x32xf32>,
    return
  }
  func.func @transform_0(%arg0: i32) -> (i32, i32, i32) {
    %c0_i32 = arith.constant 0 : i32
    %c0_i32_0 = arith.constant 0 : i32
    %c0_i32_1 = arith.constant 0 : i32
    return %arg0, %c0_i32, %c0_i32_0 : i32, i32, i32
  }
  func.func @transform_1(%arg0: i32) -> (i32, i32) {
    %c0_i32 = arith.constant 0 : i32
    %c0_i32_0 = arith.constant 0 : i32
    %c0_i32_1 = arith.constant 0 : i32
    return %c0_i32, %c0_i32_0 : i32, i32
  }
  func.func @transform_2(%arg0: i32) -> (i32, i32) {
    %c0_i32 = arith.constant 0 : i32
    %c0_i32_0 = arith.constant 0 : i32
    %c0_i32_1 = arith.constant 0 : i32
    return %c0_i32, %c0_i32_0 : i32, i32
  }
  func.func @transform_3(%arg0: i32) -> (i32, i32) {
    %c0_i32 = arith.constant 0 : i32
    %c0_i32_0 = arith.constant 0 : i32
    %c0_i32_1 = arith.constant 0 : i32
    return %c0_i32, %c0_i32_0 : i32, i32
  }
  func.func @transform_4(%arg0: i32) -> (i32, i32, i32) {
    %c0_i32 = arith.constant 0 : i32
    %c0_i32_0 = arith.constant 0 : i32
    %c0_i32_1 = arith.constant 0 : i32
    return %arg0, %c0_i32, %c0_i32_0 : i32, i32, i32
  }
}

module attributes {stable_mosaic.version = 11 : i64} {
  func.func @_attention_kernel(%arg0: i32, %arg1: memref<1x8x32xbf16, #tpu.memory_space<vmem>>, %arg2: memref<32x96xbf16, #tpu.memory_space<vmem>>, %arg3: memref<32x32xbf16, #tpu.memory_space<vmem>>, %arg4: memref<1x32xf32, #tpu.memory_space<vmem>>, %arg5: memref<1x8x32xf32, #tpu.memory_space<vmem>>) attributes {dimension_semantics = [#tpu.dimension_semantics<parallel>], iteration_bounds = array<i64: 2>, scalar_prefetch = 0 : i64, scratch_operands = 0 : i64, tpu.core_type = #tpu.core_type<tc>, window_params = [{transform_indices = @transform_0, window_bounds = array<i64: 1, 8, 32>}, {pipeline_mode = #tpu.pipeline_mode<synchronous>, transform_indices = @transform_1, window_bounds = array<i64: 32, 96>}, {pipeline_mode = #tpu.pipeline_mode<synchronous>, transform_indices = @transform_2, window_bounds = array<i64: 32, 32>}, {pipeline_mode = #tpu.pipeline_mode<synchronous>, transform_indices = @transform_3, window_bounds = array<i64: 1, 32>}, {transform_indices = @transform_4, window_bounds = array<i64: 1, 8, 32>}]} {
    %c0 = arith.constant 0 : index
    %c0_0 = arith.constant 0 : index
    %c0_1 = arith.constant 0 : index
    %0 = vector.load %arg1[%c0, %c0_0, %c0_1] : memref<1x8x32xbf16, #tpu.memory_space<vmem>>, vector<1x8x32xbf16>
    %1 = vector.shape_cast %0 : vector<1x8x32xbf16> to vector<8x32xbf16>
    %c0_2 = arith.constant 0 : index
    %c0_3 = arith.constant 0 : index
    %2 = vector.load %arg2[%c0_2, %c0_3] : memref<32x96xbf16, #tpu.memory_space<vmem>>, vector<32x96xbf16>
    %cst = arith.constant dense<0.000000e+00> : vector<8x96xf32>
    %3 = tpu.matmul %1, %2, %cst {dimension_numbers = #tpu.dot_dimension_numbers<[1], [0], [0], [1], [0, 0, 1, 1], [], []>} : vector<8x32xbf16>, vector<32x96xbf16>, vector<8x96xf32> -> vector<8x96xf32>
    %4 = vector.extract_strided_slice %3 {offsets = [0, 0], sizes = [8, 32], strides = [1, 1]} : vector<8x96xf32> to vector<8x32xf32>
    %5 = vector.shape_cast %4 : vector<8x32xf32> to vector<1x8x4x8xf32>
    %6 = tpu.transpose %5, [0, 2, 1, 3] : vector<1x8x4x8xf32> -> vector<1x4x8x8xf32>
    %7 = vector.shape_cast %6 : vector<1x4x8x8xf32> to vector<4x8x8xf32>
    %8 = arith.truncf %7 : vector<4x8x8xf32> to vector<4x8x8xbf16>
    %9 = vector.extract_strided_slice %3 {offsets = [0, 32], sizes = [8, 32], strides = [1, 1]} : vector<8x96xf32> to vector<8x32xf32>
    %10 = vector.shape_cast %9 : vector<8x32xf32> to vector<1x8x4x8xf32>
    %11 = tpu.transpose %10, [0, 2, 1, 3] : vector<1x8x4x8xf32> -> vector<1x4x8x8xf32>
    %12 = vector.shape_cast %11 : vector<1x4x8x8xf32> to vector<4x8x8xf32>
    %13 = arith.truncf %12 : vector<4x8x8xf32> to vector<4x8x8xbf16>
    %14 = vector.extract_strided_slice %3 {offsets = [0, 64], sizes = [8, 32], strides = [1, 1]} : vector<8x96xf32> to vector<8x32xf32>
    %15 = vector.shape_cast %14 : vector<8x32xf32> to vector<1x8x4x8xf32>
    %16 = tpu.transpose %15, [0, 2, 1, 3] : vector<1x8x4x8xf32> -> vector<1x4x8x8xf32>
    %17 = vector.shape_cast %16 : vector<1x4x8x8xf32> to vector<4x8x8xf32>
    %18 = arith.truncf %17 : vector<4x8x8xf32> to vector<4x8x8xbf16>
    "tpu.trace_start"() <{level = 10 : i32, message = "bqd,bkd->bqk"}> : () -> ()
    %cst_4 = arith.constant dense<0.000000e+00> : vector<4x8x8xf32>
    %19 = tpu.matmul %8, %13, %cst_4 {dimension_numbers = #tpu.dot_dimension_numbers<[2], [2], [1], [1], [0, 0, 0, 1, 1, 1], [0], [0]>} : vector<4x8x8xbf16>, vector<4x8x8xbf16>, vector<4x8x8xf32> -> vector<4x8x8xf32>
    "tpu.trace_stop"() : () -> ()
    %cst_5 = arith.constant dense<0xFF800000> : vector<4x8xf32>
    %20 = vector.multi_reduction <maximumf>, %19, %cst_5 [2] : vector<4x8x8xf32> to vector<4x8xf32>
    %21 = vector.shape_cast %20 : vector<4x8xf32> to vector<4x8x1xf32>
    %22 = vector.broadcast %21 : vector<4x8x1xf32> to vector<4x8x8xf32>
    %23 = arith.subf %19, %22 : vector<4x8x8xf32>
    %24 = math.exp %23 : vector<4x8x8xf32>
    %cst_6 = arith.constant dense<0.000000e+00> : vector<4x8xf32>
    %25 = vector.multi_reduction <add>, %24, %cst_6 [2] : vector<4x8x8xf32> to vector<4x8xf32>
    %26 = vector.shape_cast %25 : vector<4x8xf32> to vector<4x8x1xf32>
    %27 = vector.broadcast %26 : vector<4x8x1xf32> to vector<4x8x8xf32>
    %28 = arith.divf %24, %27 : vector<4x8x8xf32>
    %29 = arith.truncf %28 : vector<4x8x8xf32> to vector<4x8x8xbf16>
    "tpu.trace_start"() <{level = 10 : i32, message = "bqk,bkd->bqd"}> : () -> ()
    %cst_7 = arith.constant dense<0.000000e+00> : vector<4x8x8xf32>
    %30 = tpu.matmul %29, %18, %cst_7 {dimension_numbers = #tpu.dot_dimension_numbers<[2], [1], [1], [2], [0, 0, 0, 1, 1, 2], [0], [0]>} : vector<4x8x8xbf16>, vector<4x8x8xbf16>, vector<4x8x8xf32> -> vector<4x8x8xf32>
    "tpu.trace_stop"() : () -> ()
    %31 = vector.shape_cast %30 : vector<4x8x8xf32> to vector<1x4x8x8xf32>
    %32 = tpu.transpose %31, [0, 2, 1, 3] : vector<1x4x8x8xf32> -> vector<1x8x4x8xf32>
    %33 = vector.shape_cast %32 : vector<1x8x4x8xf32> to vector<8x32xf32>
    %34 = arith.truncf %33 : vector<8x32xf32> to vector<8x32xbf16>
    %c0_8 = arith.constant 0 : index
    %c0_9 = arith.constant 0 : index
    %35 = vector.load %arg3[%c0_8, %c0_9] : memref<32x32xbf16, #tpu.memory_space<vmem>>, vector<32x32xbf16>
    %cst_10 = arith.constant dense<0.000000e+00> : vector<8x32xf32>
    %36 = tpu.matmul %34, %35, %cst_10 {dimension_numbers = #tpu.dot_dimension_numbers<[1], [0], [0], [1], [0, 0, 1, 1], [], []>} : vector<8x32xbf16>, vector<32x32xbf16>, vector<8x32xf32> -> vector<8x32xf32>
    %c0_11 = arith.constant 0 : index
    %c0_12 = arith.constant 0 : index
    %37 = vector.load %arg4[%c0_11, %c0_12] : memref<1x32xf32, #tpu.memory_space<vmem>>, vector<1x32xf32>
    %38 = vector.broadcast %37 : vector<1x32xf32> to vector<8x32xf32>
    %39 = arith.addf %36, %38 : vector<8x32xf32>
    %40 = vector.shape_cast %39 : vector<8x32xf32> to vector<1x8x32xf32>
    %c0_13 = arith.constant 0 : index
    %c0_14 = arith.constant 0 : index
    %c0_15 = arith.constant 0 : index
    %41 = vector.load %arg5[%c0_13, %c0_14, %c0_15] : memref<1x8x32xf32, #tpu.memory_space<vmem>>, vector<1x8x32xf32>
    tpu.vector_store %arg5[%c0_13, %c0_14, %c0_15], %40 {strides = array<i32>} : memref<1x8x32xf32, #tpu.memory_space<vmem>>, vector<1x8x32xf32>,
    return
  }
  func.func @transform_0(%arg0: i32) -> (i32, i32, i32) {
    %c0_i32 = arith.constant 0 : i32
    %c0_i32_0 = arith.constant 0 : i32
    %c0_i32_1 = arith.constant 0 : i32
    return %arg0, %c0_i32, %c0_i32_0 : i32, i32, i32
  }
  func.func @transform_1(%arg0: i32) -> (i32, i32) {
    %c0_i32 = arith.constant 0 : i32
    %c0_i32_0 = arith.constant 0 : i32
    %c0_i32_1 = arith.constant 0 : i32
    return %c0_i32, %c0_i32_0 : i32, i32
  }
  func.func @transform_2(%arg0: i32) -> (i32, i32) {
    %c0_i32 = arith.constant 0 : i32
    %c0_i32_0 = arith.constant 0 : i32
    %c0_i32_1 = arith.constant 0 : i32
    return %c0_i32, %c0_i32_0 : i32, i32
  }
  func.func @transform_3(%arg0: i32) -> (i32, i32) {
    %c0_i32 = arith.constant 0 : i32
    %c0_i32_0 = arith.constant 0 : i32
    %c0_i32_1 = arith.constant 0 : i32
    return %c0_i32, %c0_i32_0 : i32, i32
  }
  func.func @transform_4(%arg0: i32) -> (i32, i32, i32) {
    %c0_i32 = arith.constant 0 : i32
    %c0_i32_0 = arith.constant 0 : i32
    %c0_i32_1 = arith.constant 0 : i32
    return %arg0, %c0_i32, %c0_i32_0 : i32, i32, i32
  }
}

</mosaic_0001>

<llo_original>
// kernel: tpu_custom_call.1
$region0: #{tpu_custom_call.1}
  #allocation0 [shape = 'u32[]', space=smem, size = 0x4, offset = 0x4, fixed_abs, tag = 'smem constant byte address 0x4 - core index']
  #allocation1 [shape = 'u32[144,128]{1,0:T(1,128)}', space=vmem, size = 0x12000, scoped, tag = 'internal scratch']
  %s0 = inlined_call_operand.hbm [shape: bf16[2,8,32], index: 0, kind: input, shape index: {}]
  %s1 = inlined_call_operand.hbm [shape: bf16[32,96], index: 1, kind: input, shape index: {}]
  %s2 = inlined_call_operand.hbm [shape: bf16[32,32], index: 2, kind: input, shape index: {}]
  %s3 = inlined_call_operand.vmem [shape: f32[1,32], index: 3, kind: input, shape index: {}]
  %s4 = inlined_call_operand.hbm [shape: f32[2,8,32], index: 4, kind: output, shape index: {}]
  %s5 = sld [smem:[#allocation0]]
  $region61: #{tpu_custom_call.1} parent=0
    _
  %s7 = ssub.s32 1, %s5
  %s8 = scalar_select 0, %s7, %s5
  $region1: #{tpu_custom_call.1} parent=0
    #allocation2 [shape = 'u8[4096]{0}', space=vmem, size = 0x1000, scoped, tag = 'input window, operand 0']
    #allocation3 [shape = 's32[2]{0}', space=sflag, size = 0x8, scoped, tag = 'scoped memory for tpu_custom_call.1']
    #allocation4 [shape = 's32[2]{0}', space=sflag, size = 0x8, scoped, tag = 'scoped memory for tpu_custom_call.1']
    #allocation5 [shape = 'u8[8192]{0}', space=vmem, size = 0x2000, scoped, tag = 'input window, operand 1, single buffered']
    #allocation6 [shape = 's32[1]{0}', space=sflag, size = 0x4, scoped, tag = 'scoped memory for tpu_custom_call.1']
    #allocation7 [shape = 'u8[8192]{0}', space=vmem, size = 0x2000, scoped, tag = 'input window, operand 2, single buffered']
    #allocation8 [shape = 'u8[8192]{0}', space=vmem, size = 0x2000, scoped, tag = 'output window, operand 0']
    %9 = vsyncpa [#allocation3], 0
    %s10 = scalar_lea.sflag [#allocation3], 1
    %11 = vsyncpa %s10, 0
    %12 = vsyncpa [#allocation6], 0
    %13 = vsyncpa [#allocation4], 0
    %s14 = scalar_lea.sflag [#allocation4], 1
    %15 = vsyncpa %s14, 0
    loop: start=0, step=1, limit=4
    $region2: #{tpu_custom_call.1} parent=1 // loop_pre_header
      _
    $region3: #{tpu_custom_call.1} parent=1 // loop_header
      %s17 = sphi 0, %s21
      %p18 = scmp.ge.s32.totalorder %s17, 4
      %s27 = sphi 0, %s29
      %s30 = sphi 0, %s27
      %s31 = sphi 0, %s30
      %s47 = sphi 0, %s31
      %s51 = sphi 0, %s51
      %s53 = sphi 0, %s51
      %s54 = sphi 0, %s53
      %s68 = sphi 0, %s54
      %s72 = sphi 0, %s72
      %s74 = sphi 0, %s72
      %s75 = sphi 0, %s74
      %s89 = sphi 0, %s75
      %s93 = sphi 0, %s93
      %s95 = sphi 0, %s93
      %s96 = sphi 0, %s95
      %s110 = sphi 0, %s96
      %s116 = sphi 0, %s118
      %s119 = sphi 0, %s116
      %s120 = sphi 0, %s119
      %s136 = sphi 0, %s120
    $region4: #{tpu_custom_call.1} parent=1 // loop_header_branch
      %20 = sbr.rel (%p18) target = $region8
    $region5: #{tpu_custom_call.1} parent=1 // loop_body
      %s22 = ssub.s32 %s17, 1
      %s23 = ssub.s32 %s17, 2
      %s24 = sadd.s32 %s17, 1
      %s25 = ssub.s32 %s17, %s24
      %p26 = scmp.eq.s32.totalorder %s25, 0
      %s28 = sadd.s32 %s27, 1
      %s29 = scalar_select %p26, %s27, %s28
      %p32 = pneg %p26
      %p33 = scmp.eq.s32.totalorder %s17, 1
      %p34 = por %p32, %p33
      %p35 = scmp.ne.s32.totalorder %s27, %s30
      %p36 = scmp.eq.s32.totalorder %s17, 0
      %p37 = por %p35, %p36
      %p38 = scmp.ne.s32.totalorder %s27, %s30
      %p39 = scmp.eq.s32.totalorder %s22, 1
      %p40 = por %p38, %p39
      %p41 = scmp.ne.s32.totalorder %s30, %s31
      %p42 = scmp.eq.s32.totalorder %s22, 0
      %p43 = por %p41, %p42
      %p44 = scmp.ne.s32.totalorder %s30, %s31
      %p45 = scmp.eq.s32.totalorder %s23, 1
      %p46 = por %p44, %p45
      %p48 = scmp.ne.s32.totalorder %s31, %s47
      %p49 = scmp.eq.s32.totalorder %s23, 0
      %p50 = por %p48, %p49
      %s52 = sadd.s32 %s51, 1
      %p55 = scmp.eq.s32.totalorder %s17, 1
      %p56 = scmp.ne.s32.totalorder %s51, %s53
      %p57 = scmp.eq.s32.totalorder %s17, 0
      %p58 = por %p56, %p57
      %p59 = scmp.ne.s32.totalorder %s51, %s53
      %p60 = scmp.eq.s32.totalorder %s22, 1
      %p61 = por %p59, %p60
      %p62 = scmp.ne.s32.totalorder %s53, %s54
      %p63 = scmp.eq.s32.totalorder %s22, 0
      %p64 = por %p62, %p63
      %p65 = scmp.ne.s32.totalorder %s53, %s54
      %p66 = scmp.eq.s32.totalorder %s23, 1
      %p67 = por %p65, %p66
      %p69 = scmp.ne.s32.totalorder %s54, %s68
      %p70 = scmp.eq.s32.totalorder %s23, 0
      %p71 = por %p69, %p70
      %s73 = sadd.s32 %s72, 1
      %p76 = scmp.eq.s32.totalorder %s17, 1
      %p77 = scmp.ne.s32.totalorder %s72, %s74
      %p78 = scmp.eq.s32.totalorder %s17, 0
      %p79 = por %p77, %p78
      %p80 = scmp.ne.s32.totalorder %s72, %s74
      %p81 = scmp.eq.s32.totalorder %s22, 1
      %p82 = por %p80, %p81
      %p83 = scmp.ne.s32.totalorder %s74, %s75
      %p84 = scmp.eq.s32.totalorder %s22, 0
      %p85 = por %p83, %p84
      %p86 = scmp.ne.s32.totalorder %s74, %s75
      %p87 = scmp.eq.s32.totalorder %s23, 1
      %p88 = por %p86, %p87
      %p90 = scmp.ne.s32.totalorder %s75, %s89
      %p91 = scmp.eq.s32.totalorder %s23, 0
      %p92 = por %p90, %p91
      %s94 = sadd.s32 %s93, 1
      %p97 = scmp.eq.s32.totalorder %s17, 1
      %p98 = scmp.ne.s32.totalorder %s93, %s95
      %p99 = scmp.eq.s32.totalorder %s17, 0
      %p100 = por %p98, %p99
      %p101 = scmp.ne.s32.totalorder %s93, %s95
      %p102 = scmp.eq.s32.totalorder %s22, 1
      %p103 = por %p101, %p102
      %p104 = scmp.ne.s32.totalorder %s95, %s96
      %p105 = scmp.eq.s32.totalorder %s22, 0
      %p106 = por %p104, %p105
      %p107 = scmp.ne.s32.totalorder %s95, %s96
      %p108 = scmp.eq.s32.totalorder %s23, 1
      %p109 = por %p107, %p108
      %p111 = scmp.ne.s32.totalorder %s96, %s110
      %p112 = scmp.eq.s32.totalorder %s23, 0
      %p113 = por %p111, %p112
      %s114 = ssub.s32 %s17, %s24
      %p115 = scmp.eq.s32.totalorder %s114, 0
      %s117 = sadd.s32 %s116, 1
      %s118 = scalar_select %p115, %s116, %s117
      %p121 = pneg %p115
      %p122 = scmp.eq.s32.totalorder %s17, 1
      %p123 = por %p121, %p122
      %p124 = scmp.ne.s32.totalorder %s116, %s119
      %p125 = scmp.eq.s32.totalorder %s17, 0
      %p126 = por %p124, %p125
      %p127 = scmp.ne.s32.totalorder %s116, %s119
      %p128 = scmp.eq.s32.totalorder %s22, 1
      %p129 = por %p127, %p128
      %p130 = scmp.ne.s32.totalorder %s119, %s120
      %p131 = scmp.eq.s32.totalorder %s22, 0
      %p132 = por %p130, %p131
      %p133 = scmp.ne.s32.totalorder %s119, %s120
      %p134 = scmp.eq.s32.totalorder %s23, 1
      %p135 = por %p133, %p134
      %p137 = scmp.ne.s32.totalorder %s120, %s136
      %p138 = scmp.eq.s32.totalorder %s23, 0
      %p139 = por %p137, %p138
      %p140 = scmp.le.s32.totalorder 1, %s17
      %p141 = scmp.lt.s32.totalorder %s17, 3
      %p142 = pnand %p140, %p141
      %p143 = pneg %p142
      // Predicated region
      $region9: #{tpu_custom_call.1} parent=5 // pred_check
        _
      $region10: #{tpu_custom_call.1} parent=5 // pred_check_branch
        %145 = sbr.rel (%p142) target = $region12
      $region11: #{tpu_custom_call.1} parent=5 // pred_region
        %s146 = ssub.s32 %s17, 1
        // Predicated region
        $region13: #{tpu_custom_call.1} parent=11 // pred_check
          %p147 = pneg %p64
        $region14: #{tpu_custom_call.1} parent=11 // pred_check_branch
          %149 = sbr.rel (%p147) target = $region16
        $region15: #{tpu_custom_call.1} parent=11 // pred_region
          %s151 = ssub.s32 256, 256
          %152 = vsyncadd [#allocation6], %s151
          %s153 = sshll.u32 [#allocation5], 4
          %s154 = int_to_ptr.vmem [resolvable:$true] %s153
          %159 = dma.hbm_to_vmem [thread:$0]  %s1, 256, %s154, [#allocation6], 64, 64, 4
        $region16: #{tpu_custom_call.1} parent=11 // pred_fallthru
          _
        // Predicated region
        $region17: #{tpu_custom_call.1} parent=11 // pred_check
          %p160 = pneg %p85
        $region18: #{tpu_custom_call.1} parent=11 // pred_check_branch
          %162 = sbr.rel (%p160) target = $region20
        $region19: #{tpu_custom_call.1} parent=11 // pred_region
          %s164 = ssub.s32 256, 256
          %165 = vsyncadd [#allocation6], %s164
          %s166 = sshll.u32 [#allocation7], 4
          %s167 = int_to_ptr.vmem [resolvable:$true] %s166
          %172 = dma.hbm_to_vmem [thread:$0]  %s2, 256, %s167, [#allocation6], 64, 64, 4
        $region20: #{tpu_custom_call.1} parent=11 // pred_fallthru
          _
        // Predicated region
        $region21: #{tpu_custom_call.1} parent=11 // pred_check
          %p173 = pneg %p106
        $region22: #{tpu_custom_call.1} parent=11 // pred_check_branch
          %175 = sbr.rel (%p173) target = $region24
        $region23: #{tpu_custom_call.1} parent=11 // pred_region
          _
        $region24: #{tpu_custom_call.1} parent=11 // pred_fallthru
          _
      $region12: #{tpu_custom_call.1} parent=5 // pred_fallthru
        _
      %p176 = scmp.lt.s32.totalorder %s17, 2
      // Predicated region
      $region25: #{tpu_custom_call.1} parent=5 // pred_check
        %p177 = pneg %p176
      $region26: #{tpu_custom_call.1} parent=5 // pred_check_branch
        %179 = sbr.rel (%p177) target = $region28
      $region27: #{tpu_custom_call.1} parent=5 // pred_region
        // Predicated region
        $region29: #{tpu_custom_call.1} parent=27 // pred_check
          %p180 = pneg %p37
        $region30: #{tpu_custom_call.1} parent=27 // pred_check_branch
          %182 = sbr.rel (%p180) target = $region32
        $region31: #{tpu_custom_call.1} parent=27 // pred_region
          %s183 = sand.u32 %s27, 1
          %s184 = scalar_lea.sflag [#allocation3], %s183
          %s185 = sand.u32 %s27, 1
          %s186 = smul.addr %s185, 4
          %s187 = scalar_lea.vmem [#allocation2], %s186
          %s189 = ssub.s32 64, 64
          %190 = vsyncadd %s184, %s189
          %s191 = smul.addr %s17, 64
          %s192 = scalar_lea.hbm %s0, %s191
          %s194 = sshll.u32 %s187, 4
          %s195 = int_to_ptr.vmem [resolvable:$true] %s194
          %197 = dma.hbm_to_vmem [thread:$0]  %s192, 64, %s195, %s184
        $region32: #{tpu_custom_call.1} parent=27 // pred_fallthru
          _
      $region28: #{tpu_custom_call.1} parent=5 // pred_fallthru
        _
      %p198 = scmp.le.s32.totalorder 1, %s17
      %p199 = scmp.lt.s32.totalorder %s17, 3
      %p200 = pnand %p198, %p199
      %p201 = pneg %p200
      // Predicated region
      $region33: #{tpu_custom_call.1} parent=5 // pred_check
        _
      $region34: #{tpu_custom_call.1} parent=5 // pred_check_branch
        %203 = sbr.rel (%p200) target = $region36
      $region35: #{tpu_custom_call.1} parent=5 // pred_region
        %s204 = ssub.s32 %s17, 1
        %s205 = sand.u32 %s30, 1
        %s206 = scalar_lea.sflag [#allocation3], %s205
        %s207 = sand.u32 %s30, 1
        %s208 = smul.addr %s207, 4
        %s209 = scalar_lea.vmem [#allocation2], %s208
        // Predicated region
        $region37: #{tpu_custom_call.1} parent=35 // pred_check
          %p210 = pneg %p43
        $region38: #{tpu_custom_call.1} parent=35 // pred_check_branch
          %212 = sbr.rel (%p210) target = $region40
        $region39: #{tpu_custom_call.1} parent=35 // pred_region
          %213 = dma.done %s206, 64
        $region40: #{tpu_custom_call.1} parent=35 // pred_fallthru
          _
        // Predicated region
        $region41: #{tpu_custom_call.1} parent=35 // pred_check
          %p214 = pneg %p64
        $region42: #{tpu_custom_call.1} parent=35 // pred_check_branch
          %216 = sbr.rel (%p214) target = $region44
        $region43: #{tpu_custom_call.1} parent=35 // pred_region
          %217 = dma.done [#allocation6], 256
        $region44: #{tpu_custom_call.1} parent=35 // pred_fallthru
          _
        // Predicated region
        $region45: #{tpu_custom_call.1} parent=35 // pred_check
          %p218 = pneg %p85
        $region46: #{tpu_custom_call.1} parent=35 // pred_check_branch
          %220 = sbr.rel (%p218) target = $region48
        $region47: #{tpu_custom_call.1} parent=35 // pred_region
          %221 = dma.done [#allocation6], 256
        $region48: #{tpu_custom_call.1} parent=35 // pred_fallthru
          _
        %s222 = sand.u32 %s30, 1
        %s223 = scalar_lea.sflag [#allocation3], %s222
        %s224 = sand.u32 %s30, 1
        %s225 = smul.addr %s224, 4
        %s226 = scalar_lea.vmem [#allocation2], %s225
        %p227 = pneg %p43
        %p228 = pneg %p40
        %p229 = pneg %p64
        %p230 = pneg %p61
        %p231 = pneg %p85
        %p232 = pneg %p82
        %p233 = pneg %p106
        %p234 = pneg %p103
        %p235 = pneg %p132
        %p236 = pneg %p129
        %s237 = sand.u32 %s119, 1
        %s238 = scalar_lea.sflag [#allocation4], %s237
        %s239 = sand.u32 %s119, 1
        %s240 = smul.addr %s239, 8
        %s241 = scalar_lea.vmem [#allocation8], %s240
        %v243 = vld [vmem:[%s209] sm:$0xf]
        %v244 = vld [vmem:[#allocation5] sm:$0xf]
        %v245 = vld [vmem:[#allocation5 + $0x4] sm:$0xf]
        %v246 = vld [vmem:[#allocation5 + $0x8] sm:$0xf]
        %v247 = vld [vmem:[#allocation5 + $0xc] sm:$0xf]
        %v252 = vunpack.c.l.b16 %v244
        %v253 = vunpack.c.l.b16 %v245
        %v254 = vunpack.c.l.b16 %v246
        %v255 = vunpack.c.l.b16 %v247
        %v256 = vpack.c.b16 %v253, %v252
        %v257 = vpack.c.b16 %v255, %v254
        %vm260 = vcmask 261120
        %v262 = vsel %vm260, %v243, 0
        %264 = vmatprep.subr.bf16.mxu0 0
        %265 = vmatpush1.bf16.msra.mxu0 %v256
        %266 = vmatprep.subr.bf16.mxu0 0
        %267 = vmatpush1.bf16.msra.mxu0 %v257
        %268 = vmatprep.subr.bf16.mxu0 0
        %269 = vmatpush1.bf16.msra.mxu0 0
        %270 = vmatprep.subr.bf16.mxu0 0
        %271 = vmatpush1.bf16.msra.mxu0 0
        %272 = vmatprep.subr.bf16.mxu0 0
        %273 = vmatpush1.bf16.msra.mxu0 0
        %274 = vmatprep.subr.bf16.mxu0 0
        %275 = vmatpush1.bf16.msra.mxu0 0
        %276 = vmatprep.subr.bf16.mxu0 0
        %277 = vmatpush1.bf16.msra.mxu0 0
        %278 = vmatprep.subr.bf16.mxu0 0
        %279 = vmatpush1.bf16.msra.mxu0 0
        %280 = vmatprep.subr.bf16.mxu0 0
        %281 = vmatpush1.bf16.msra.mxu0 0
        %282 = vmatprep.subr.bf16.mxu0 0
        %283 = vmatpush1.bf16.msra.mxu0 0
        %284 = vmatprep.subr.bf16.mxu0 0
        %285 = vmatpush1.bf16.msra.mxu0 0
        %286 = vmatprep.subr.bf16.mxu0 0
        %287 = vmatpush1.bf16.msra.mxu0 0
        %288 = vmatprep.subr.bf16.mxu0 0
        %289 = vmatpush1.bf16.msra.mxu0 0
        %290 = vmatprep.subr.bf16.mxu0 0
        %291 = vmatpush1.bf16.msra.mxu0 0
        %292 = vmatprep.subr.bf16.mxu0 0
        %293 = vmatpush1.bf16.msra.mxu0 0
        %294 = vmatprep.subr.bf16.mxu0 0
        %295 = vmatpush1.bf16.msra.mxu0 0
        %296 = vmatprep.mubr.bf16.mxu0 0
        %297 = vmatmul.mubr.bf16.gmra.mrb[0].mxu0 %v262
        %v298 = vpop.f32.mrb[0].mxu0
        %v299 = vadd.f32 0.0, %v298
        %v300 = vpop.f32.mrb[0].mxu0
        %v301 = vpop.f32.mrb[0].mxu0
        %v302 = vpop.f32.mrb[0].mxu0
        %303 = vdwg.mxu0
        %305 = vrot.lane.b32.xlu0 %v299, 120
        %v306 = vpop.permute.xlu0 %305
        %308 = vrot.lane.b32.xlu0 %v299, 112
        %v309 = vpop.permute.xlu0 %308
        %311 = vrot.lane.b32.xlu0 %v299, 104
        %v312 = vpop.permute.xlu0 %311
        %v314 = vcombine.low %v299, %v309
        %v315 = vcombine.high %v299, %v309
        %v317 = vunpack.c.l.s4 1983009808
        %v318 = vunpack.c.0.s8 %v317
        %v319 = vlaneseq
        %v320 = vshrl.u32 %v319, 7
        %v321 = vsub.s32 %v318, %v320
        %v322 = vrot.slane %v314, %v321
        %v324 = vunpack.c.l.s4 1983009808
        %v325 = vunpack.c.0.s8 %v324
        %v326 = vlaneseq
        %v327 = vshrl.u32 %v326, 7
        %v328 = vsub.s32 %v325, %v327
        %v329 = vrot.slane %v315, %v328
        %v330 = vcombine.low %v306, %v312
        %v331 = vcombine.high %v306, %v312
        %v333 = vunpack.c.l.s4 1983009808
        %v334 = vunpack.c.0.s8 %v333
        %v335 = vlaneseq
        %v336 = vshrl.u32 %v335, 7
        %v337 = vsub.s32 %v334, %v336
        %v338 = vrot.slane %v330, %v337
        %v340 = vunpack.c.l.s4 1983009808
        %v341 = vunpack.c.0.s8 %v340
        %v342 = vlaneseq
        %v343 = vshrl.u32 %v342, 7
        %v344 = vsub.s32 %v341, %v343
        %v345 = vrot.slane %v331, %v344
        %v346 = vcombine.low %v322, %v338
        %v347 = vcombine.high %v322, %v338
        %v349 = vunpack.c.l.s4 1934713408
        %v350 = vunpack.c.0.s8 %v349
        %v351 = vlaneseq
        %v352 = vshrl.u32 %v351, 7
        %v353 = vsub.s32 %v350, %v352
        %v354 = vrot.slane %v346, %v353
        %v356 = vunpack.c.l.s4 1934713408
        %v357 = vunpack.c.0.s8 %v356
        %v358 = vlaneseq
        %v359 = vshrl.u32 %v358, 7
        %v360 = vsub.s32 %v357, %v359
        %v361 = vrot.slane %v347, %v360
        %v362 = vcombine.low %v329, %v345
        %v363 = vcombine.high %v329, %v345
        %v365 = vunpack.c.l.s4 1934713408
        %v366 = vunpack.c.0.s8 %v365
        %v367 = vlaneseq
        %v368 = vshrl.u32 %v367, 7
        %v369 = vsub.s32 %v366, %v368
        %v370 = vrot.slane %v362, %v369
        %v372 = vunpack.c.l.s4 1934713408
        %v373 = vunpack.c.0.s8 %v372
        %v374 = vlaneseq
        %v375 = vshrl.u32 %v374, 7
        %v376 = vsub.s32 %v373, %v375
        %v377 = vrot.slane %v363, %v376
        %v378 = vcombine.high %v354, 0.0
        %v379 = vcombine.high %v361, 0.0
        %v380 = vcombine.high %v370, 0.0
        %v381 = vcombine.high %v377, 0.0
        %v382 = vcombine.low %v354, %v361
        %v384 = vunpack.c.l.s4 1983009808
        %v385 = vunpack.c.0.s8 %v384
        %v386 = vlaneseq
        %v387 = vshrl.u32 %v386, 7
        %v388 = vsub.s32 %v385, %v387
        %v389 = vrot.slane %v382, %v388
        %v390 = vcombine.low %v378, %v379
        %v392 = vunpack.c.l.s4 1983009808
        %v393 = vunpack.c.0.s8 %v392
        %v394 = vlaneseq
        %v395 = vshrl.u32 %v394, 7
        %v396 = vsub.s32 %v393, %v395
        %v397 = vrot.slane %v390, %v396
        %v398 = vcombine.low %v370, %v377
        %v400 = vunpack.c.l.s4 1983009808
        %v401 = vunpack.c.0.s8 %v400
        %v402 = vlaneseq
        %v403 = vshrl.u32 %v402, 7
        %v404 = vsub.s32 %v401, %v403
        %v405 = vrot.slane %v398, %v404
        %v406 = vcombine.low %v380, %v381
        %v408 = vunpack.c.l.s4 1983009808
        %v409 = vunpack.c.0.s8 %v408
        %v410 = vlaneseq
        %v411 = vshrl.u32 %v410, 7
        %v412 = vsub.s32 %v409, %v411
        %v413 = vrot.slane %v406, %v412
        %v414 = vcombine.low %v389, %v397
        %v415 = vcombine.high %v389, %v397
        %v417 = vunpack.c.l.s4 1934713408
        %v418 = vunpack.c.0.s8 %v417
        %v419 = vlaneseq
        %v420 = vshrl.u32 %v419, 7
        %v421 = vsub.s32 %v418, %v420
        %v422 = vrot.slane %v414, %v421
        %v424 = vunpack.c.l.s4 1934713408
        %v425 = vunpack.c.0.s8 %v424
        %v426 = vlaneseq
        %v427 = vshrl.u32 %v426, 7
        %v428 = vsub.s32 %v425, %v427
        %v429 = vrot.slane %v415, %v428
        %v430 = vcombine.low %v405, %v413
        %v431 = vcombine.high %v405, %v413
        %v433 = vunpack.c.l.s4 1934713408
        %v434 = vunpack.c.0.s8 %v433
        %v435 = vlaneseq
        %v436 = vshrl.u32 %v435, 7
        %v437 = vsub.s32 %v434, %v436
        %v438 = vrot.slane %v430, %v437
        %v440 = vunpack.c.l.s4 1934713408
        %v441 = vunpack.c.0.s8 %v440
        %v442 = vlaneseq
        %v443 = vshrl.u32 %v442, 7
        %v444 = vsub.s32 %v441, %v443
        %v445 = vrot.slane %v431, %v444
        %v446 = vcombine.low %v422, %v438
        %v447 = vcombine.high %v422, %v438
        %v448 = vcombine.low %v429, %v445
        %v449 = vcombine.high %v429, %v445
        %v450 = vpack.c.bf16 %v446, %v446
        %v451 = vpack.c.bf16 %v447, %v447
        %v452 = vpack.c.bf16 %v448, %v448
        %v453 = vpack.c.bf16 %v449, %v449
        %454 = vrot.lane.b32.xlu0 %v299, 96
        %v455 = vpop.permute.xlu0 %454
        %456 = vrot.lane.b32.xlu0 %v306, 96
        %v457 = vpop.permute.xlu0 %456
        %458 = vrot.lane.b32.xlu0 %v309, 96
        %v459 = vpop.permute.xlu0 %458
        %460 = vrot.lane.b32.xlu0 %v312, 96
        %v461 = vpop.permute.xlu0 %460
        %v466 = vcombine.low %v455, %v459
        %v467 = vcombine.high %v455, %v459
        %v469 = vunpack.c.l.s4 1983009808
        %v470 = vunpack.c.0.s8 %v469
        %v471 = vlaneseq
        %v472 = vshrl.u32 %v471, 7
        %v473 = vsub.s32 %v470, %v472
        %v474 = vrot.slane %v466, %v473
        %v476 = vunpack.c.l.s4 1983009808
        %v477 = vunpack.c.0.s8 %v476
        %v478 = vlaneseq
        %v479 = vshrl.u32 %v478, 7
        %v480 = vsub.s32 %v477, %v479
        %v481 = vrot.slane %v467, %v480
        %v482 = vcombine.low %v457, %v461
        %v483 = vcombine.high %v457, %v461
        %v485 = vunpack.c.l.s4 1983009808
        %v486 = vunpack.c.0.s8 %v485
        %v487 = vlaneseq
        %v488 = vshrl.u32 %v487, 7
        %v489 = vsub.s32 %v486, %v488
        %v490 = vrot.slane %v482, %v489
        %v492 = vunpack.c.l.s4 1983009808
        %v493 = vunpack.c.0.s8 %v492
        %v494 = vlaneseq
        %v495 = vshrl.u32 %v494, 7
        %v496 = vsub.s32 %v493, %v495
        %v497 = vrot.slane %v483, %v496
        %v498 = vcombine.low %v474, %v490
        %v499 = vcombine.high %v474, %v490
        %v501 = vunpack.c.l.s4 1934713408
        %v502 = vunpack.c.0.s8 %v501
        %v503 = vlaneseq
        %v504 = vshrl.u32 %v503, 7
        %v505 = vsub.s32 %v502, %v504
        %v506 = vrot.slane %v498, %v505
        %v508 = vunpack.c.l.s4 1934713408
        %v509 = vunpack.c.0.s8 %v508
        %v510 = vlaneseq
        %v511 = vshrl.u32 %v510, 7
        %v512 = vsub.s32 %v509, %v511
        %v513 = vrot.slane %v499, %v512
        %v514 = vcombine.low %v481, %v497
        %v515 = vcombine.high %v481, %v497
        %v517 = vunpack.c.l.s4 1934713408
        %v518 = vunpack.c.0.s8 %v517
        %v519 = vlaneseq
        %v520 = vshrl.u32 %v519, 7
        %v521 = vsub.s32 %v518, %v520
        %v522 = vrot.slane %v514, %v521
        %v524 = vunpack.c.l.s4 1934713408
        %v525 = vunpack.c.0.s8 %v524
        %v526 = vlaneseq
        %v527 = vshrl.u32 %v526, 7
        %v528 = vsub.s32 %v525, %v527
        %v529 = vrot.slane %v515, %v528
        %v530 = vcombine.high %v506, 0.0
        %v531 = vcombine.high %v513, 0.0
        %v532 = vcombine.high %v522, 0.0
        %v533 = vcombine.high %v529, 0.0
        %v534 = vcombine.low %v506, %v513
        %v536 = vunpack.c.l.s4 1983009808
        %v537 = vunpack.c.0.s8 %v536
        %v538 = vlaneseq
        %v539 = vshrl.u32 %v538, 7
        %v540 = vsub.s32 %v537, %v539
        %v541 = vrot.slane %v534, %v540
        %v542 = vcombine.low %v530, %v531
        %v544 = vunpack.c.l.s4 1983009808
        %v545 = vunpack.c.0.s8 %v544
        %v546 = vlaneseq
        %v547 = vshrl.u32 %v546, 7
        %v548 = vsub.s32 %v545, %v547
        %v549 = vrot.slane %v542, %v548
        %v550 = vcombine.low %v522, %v529
        %v552 = vunpack.c.l.s4 1983009808
        %v553 = vunpack.c.0.s8 %v552
        %v554 = vlaneseq
        %v555 = vshrl.u32 %v554, 7
        %v556 = vsub.s32 %v553, %v555
        %v557 = vrot.slane %v550, %v556
        %v558 = vcombine.low %v532, %v533
        %v560 = vunpack.c.l.s4 1983009808
        %v561 = vunpack.c.0.s8 %v560
        %v562 = vlaneseq
        %v563 = vshrl.u32 %v562, 7
        %v564 = vsub.s32 %v561, %v563
        %v565 = vrot.slane %v558, %v564
        %v566 = vcombine.low %v541, %v549
        %v567 = vcombine.high %v541, %v549
        %v569 = vunpack.c.l.s4 1934713408
        %v570 = vunpack.c.0.s8 %v569
        %v571 = vlaneseq
        %v572 = vshrl.u32 %v571, 7
        %v573 = vsub.s32 %v570, %v572
        %v574 = vrot.slane %v566, %v573
        %v576 = vunpack.c.l.s4 1934713408
        %v577 = vunpack.c.0.s8 %v576
        %v578 = vlaneseq
        %v579 = vshrl.u32 %v578, 7
        %v580 = vsub.s32 %v577, %v579
        %v581 = vrot.slane %v567, %v580
        %v582 = vcombine.low %v557, %v565
        %v583 = vcombine.high %v557, %v565
        %v585 = vunpack.c.l.s4 1934713408
        %v586 = vunpack.c.0.s8 %v585
        %v587 = vlaneseq
        %v588 = vshrl.u32 %v587, 7
        %v589 = vsub.s32 %v586, %v588
        %v590 = vrot.slane %v582, %v589
        %v592 = vunpack.c.l.s4 1934713408
        %v593 = vunpack.c.0.s8 %v592
        %v594 = vlaneseq
        %v595 = vshrl.u32 %v594, 7
        %v596 = vsub.s32 %v593, %v595
        %v597 = vrot.slane %v583, %v596
        %v598 = vcombine.low %v574, %v590
        %v599 = vcombine.high %v574, %v590
        %v600 = vcombine.low %v581, %v597
        %v601 = vcombine.high %v581, %v597
        %v602 = vpack.c.bf16 %v598, %v598
        %v603 = vpack.c.bf16 %v599, %v599
        %v604 = vpack.c.bf16 %v600, %v600
        %v605 = vpack.c.bf16 %v601, %v601
        %606 = vrot.lane.b32.xlu0 %v299, 64
        %v607 = vpop.permute.xlu0 %606
        %608 = vrot.lane.b32.xlu0 %v306, 64
        %v609 = vpop.permute.xlu0 %608
        %610 = vrot.lane.b32.xlu0 %v309, 64
        %v611 = vpop.permute.xlu0 %610
        %612 = vrot.lane.b32.xlu0 %v312, 64
        %v613 = vpop.permute.xlu0 %612
        %v618 = vcombine.low %v607, %v611
        %v619 = vcombine.high %v607, %v611
        %v621 = vunpack.c.l.s4 1983009808
        %v622 = vunpack.c.0.s8 %v621
        %v623 = vlaneseq
        %v624 = vshrl.u32 %v623, 7
        %v625 = vsub.s32 %v622, %v624
        %v626 = vrot.slane %v618, %v625
        %v628 = vunpack.c.l.s4 1983009808
        %v629 = vunpack.c.0.s8 %v628
        %v630 = vlaneseq
        %v631 = vshrl.u32 %v630, 7
        %v632 = vsub.s32 %v629, %v631
        %v633 = vrot.slane %v619, %v632
        %v634 = vcombine.low %v609, %v613
        %v635 = vcombine.high %v609, %v613
        %v637 = vunpack.c.l.s4 1983009808
        %v638 = vunpack.c.0.s8 %v637
        %v639 = vlaneseq
        %v640 = vshrl.u32 %v639, 7
        %v641 = vsub.s32 %v638, %v640
        %v642 = vrot.slane %v634, %v641
        %v644 = vunpack.c.l.s4 1983009808
        %v645 = vunpack.c.0.s8 %v644
        %v646 = vlaneseq
        %v647 = vshrl.u32 %v646, 7
        %v648 = vsub.s32 %v645, %v647
        %v649 = vrot.slane %v635, %v648
        %v650 = vcombine.low %v626, %v642
        %v651 = vcombine.high %v626, %v642
        %v653 = vunpack.c.l.s4 1934713408
        %v654 = vunpack.c.0.s8 %v653
        %v655 = vlaneseq
        %v656 = vshrl.u32 %v655, 7
        %v657 = vsub.s32 %v654, %v656
        %v658 = vrot.slane %v650, %v657
        %v660 = vunpack.c.l.s4 1934713408
        %v661 = vunpack.c.0.s8 %v660
        %v662 = vlaneseq
        %v663 = vshrl.u32 %v662, 7
        %v664 = vsub.s32 %v661, %v663
        %v665 = vrot.slane %v651, %v664
        %v666 = vcombine.low %v633, %v649
        %v667 = vcombine.high %v633, %v649
        %v669 = vunpack.c.l.s4 1934713408
        %v670 = vunpack.c.0.s8 %v669
        %v671 = vlaneseq
        %v672 = vshrl.u32 %v671, 7
        %v673 = vsub.s32 %v670, %v672
        %v674 = vrot.slane %v666, %v673
        %v676 = vunpack.c.l.s4 1934713408
        %v677 = vunpack.c.0.s8 %v676
        %v678 = vlaneseq
        %v679 = vshrl.u32 %v678, 7
        %v680 = vsub.s32 %v677, %v679
        %v681 = vrot.slane %v667, %v680
        %v682 = vcombine.high %v658, 0.0
        %v683 = vcombine.high %v665, 0.0
        %v684 = vcombine.high %v674, 0.0
        %v685 = vcombine.high %v681, 0.0
        %v686 = vcombine.low %v658, %v665
        %v688 = vunpack.c.l.s4 1983009808
        %v689 = vunpack.c.0.s8 %v688
        %v690 = vlaneseq
        %v691 = vshrl.u32 %v690, 7
        %v692 = vsub.s32 %v689, %v691
        %v693 = vrot.slane %v686, %v692
        %v694 = vcombine.low %v682, %v683
        %v696 = vunpack.c.l.s4 1983009808
        %v697 = vunpack.c.0.s8 %v696
        %v698 = vlaneseq
        %v699 = vshrl.u32 %v698, 7
        %v700 = vsub.s32 %v697, %v699
        %v701 = vrot.slane %v694, %v700
        %v702 = vcombine.low %v674, %v681
        %v704 = vunpack.c.l.s4 1983009808
        %v705 = vunpack.c.0.s8 %v704
        %v706 = vlaneseq
        %v707 = vshrl.u32 %v706, 7
        %v708 = vsub.s32 %v705, %v707
        %v709 = vrot.slane %v702, %v708
        %v710 = vcombine.low %v684, %v685
        %v712 = vunpack.c.l.s4 1983009808
        %v713 = vunpack.c.0.s8 %v712
        %v714 = vlaneseq
        %v715 = vshrl.u32 %v714, 7
        %v716 = vsub.s32 %v713, %v715
        %v717 = vrot.slane %v710, %v716
        %v718 = vcombine.low %v693, %v701
        %v719 = vcombine.high %v693, %v701
        %v721 = vunpack.c.l.s4 1934713408
        %v722 = vunpack.c.0.s8 %v721
        %v723 = vlaneseq
        %v724 = vshrl.u32 %v723, 7
        %v725 = vsub.s32 %v722, %v724
        %v726 = vrot.slane %v718, %v725
        %v728 = vunpack.c.l.s4 1934713408
        %v729 = vunpack.c.0.s8 %v728
        %v730 = vlaneseq
        %v731 = vshrl.u32 %v730, 7
        %v732 = vsub.s32 %v729, %v731
        %v733 = vrot.slane %v719, %v732
        %v734 = vcombine.low %v709, %v717
        %v735 = vcombine.high %v709, %v717
        %v737 = vunpack.c.l.s4 1934713408
        %v738 = vunpack.c.0.s8 %v737
        %v739 = vlaneseq
        %v740 = vshrl.u32 %v739, 7
        %v741 = vsub.s32 %v738, %v740
        %v742 = vrot.slane %v734, %v741
        %v744 = vunpack.c.l.s4 1934713408
        %v745 = vunpack.c.0.s8 %v744
        %v746 = vlaneseq
        %v747 = vshrl.u32 %v746, 7
        %v748 = vsub.s32 %v745, %v747
        %v749 = vrot.slane %v735, %v748
        %v750 = vcombine.low %v726, %v742
        %v751 = vcombine.high %v726, %v742
        %v752 = vcombine.low %v733, %v749
        %v753 = vcombine.high %v733, %v749
        %v754 = vpack.c.bf16 %v750, %v750
        %v755 = vpack.c.bf16 %v751, %v751
        %v756 = vpack.c.bf16 %v752, %v752
        %v757 = vpack.c.bf16 %v753, %v753
        %vm758 = vcmask 64512
        %v760 = vsel %vm758, %v450, 0
        %v763 = vsel %vm758, %v602, 0
        %765 = vmatprep.subr.bf16.mxu0 0
        %766 = vmatpush1.bf16.xpose.msra.mxu0 %v763
        %767 = vmatprep.subr.bf16.mxu0 0
        %768 = vmatpush1.bf16.xpose.msra.mxu0 0
        %769 = vmatprep.subr.bf16.mxu0 0
        %770 = vmatpush1.bf16.xpose.msra.mxu0 0
        %771 = vmatprep.subr.bf16.mxu0 0
        %772 = vmatpush1.bf16.xpose.msra.mxu0 0
        %773 = vmatprep.subr.bf16.mxu0 0
        %774 = vmatpush1.bf16.xpose.msra.mxu0 0
        %775 = vmatprep.subr.bf16.mxu0 0
        %776 = vmatpush1.bf16.xpose.msra.mxu0 0
        %777 = vmatprep.subr.bf16.mxu0 0
        %778 = vmatpush1.bf16.xpose.msra.mxu0 0
        %779 = vmatprep.subr.bf16.mxu0 0
        %780 = vmatpush1.bf16.xpose.msra.mxu0 0
        %781 = vmatprep.subr.bf16.mxu0 0
        %782 = vmatpush1.bf16.xpose.msra.mxu0 0
        %783 = vmatprep.subr.bf16.mxu0 0
        %784 = vmatpush1.bf16.xpose.msra.mxu0 0
        %785 = vmatprep.subr.bf16.mxu0 0
        %786 = vmatpush1.bf16.xpose.msra.mxu0 0
        %787 = vmatprep.subr.bf16.mxu0 0
        %788 = vmatpush1.bf16.xpose.msra.mxu0 0
        %789 = vmatprep.subr.bf16.mxu0 0
        %790 = vmatpush1.bf16.xpose.msra.mxu0 0
        %791 = vmatprep.subr.bf16.mxu0 0
        %792 = vmatpush1.bf16.xpose.msra.mxu0 0
        %793 = vmatprep.subr.bf16.mxu0 0
        %794 = vmatpush1.bf16.xpose.msra.mxu0 0
        %795 = vmatprep.subr.bf16.mxu0 0
        %796 = vmatpush1.bf16.xpose.msra.mxu0 0
        %797 = vmatprep.mubr.bf16.mxu0 0
        %798 = vmatmul.mubr.bf16.gmra.mrb[0].mxu0 %v760
        %v799 = vpop.f32.mrb[0].mxu0
        %v800 = vadd.f32 0.0, %v799
        %v801 = vpop.f32.mrb[0].mxu0
        %v802 = vpop.f32.mrb[0].mxu0
        %v803 = vpop.f32.mrb[0].mxu0
        %804 = vdwg.mxu0
        %v806 = vsel %vm758, %v451, 0
        %v809 = vsel %vm758, %v603, 0
        %811 = vmatprep.subr.bf16.mxu0 0
        %812 = vmatpush1.bf16.xpose.msra.mxu0 %v809
        %813 = vmatprep.subr.bf16.mxu0 0
        %814 = vmatpush1.bf16.xpose.msra.mxu0 0
        %815 = vmatprep.subr.bf16.mxu0 0
        %816 = vmatpush1.bf16.xpose.msra.mxu0 0
        %817 = vmatprep.subr.bf16.mxu0 0
        %818 = vmatpush1.bf16.xpose.msra.mxu0 0
        %819 = vmatprep.subr.bf16.mxu0 0
        %820 = vmatpush1.bf16.xpose.msra.mxu0 0
        %821 = vmatprep.subr.bf16.mxu0 0
        %822 = vmatpush1.bf16.xpose.msra.mxu0 0
        %823 = vmatprep.subr.bf16.mxu0 0
        %824 = vmatpush1.bf16.xpose.msra.mxu0 0
        %825 = vmatprep.subr.bf16.mxu0 0
        %826 = vmatpush1.bf16.xpose.msra.mxu0 0
        %827 = vmatprep.subr.bf16.mxu0 0
        %828 = vmatpush1.bf16.xpose.msra.mxu0 0
        %829 = vmatprep.subr.bf16.mxu0 0
        %830 = vmatpush1.bf16.xpose.msra.mxu0 0
        %831 = vmatprep.subr.bf16.mxu0 0
        %832 = vmatpush1.bf16.xpose.msra.mxu0 0
        %833 = vmatprep.subr.bf16.mxu0 0
        %834 = vmatpush1.bf16.xpose.msra.mxu0 0
        %835 = vmatprep.subr.bf16.mxu0 0
        %836 = vmatpush1.bf16.xpose.msra.mxu0 0
        %837 = vmatprep.subr.bf16.mxu0 0
        %838 = vmatpush1.bf16.xpose.msra.mxu0 0
        %839 = vmatprep.subr.bf16.mxu0 0
        %840 = vmatpush1.bf16.xpose.msra.mxu0 0
        %841 = vmatprep.subr.bf16.mxu0 0
        %842 = vmatpush1.bf16.xpose.msra.mxu0 0
        %843 = vmatprep.mubr.bf16.mxu0 0
        %844 = vmatmul.mubr.bf16.gmra.mrb[0].mxu0 %v806
        %v845 = vpop.f32.mrb[0].mxu0
        %v846 = vadd.f32 0.0, %v845
        %v847 = vpop.f32.mrb[0].mxu0
        %v848 = vpop.f32.mrb[0].mxu0
        %v849 = vpop.f32.mrb[0].mxu0
        %850 = vdwg.mxu0
        %v852 = vsel %vm758, %v452, 0
        %v855 = vsel %vm758, %v604, 0
        %857 = vmatprep.subr.bf16.mxu0 0
        %858 = vmatpush1.bf16.xpose.msra.mxu0 %v855
        %859 = vmatprep.subr.bf16.mxu0 0
        %860 = vmatpush1.bf16.xpose.msra.mxu0 0
        %861 = vmatprep.subr.bf16.mxu0 0
        %862 = vmatpush1.bf16.xpose.msra.mxu0 0
        %863 = vmatprep.subr.bf16.mxu0 0
        %864 = vmatpush1.bf16.xpose.msra.mxu0 0
        %865 = vmatprep.subr.bf16.mxu0 0
        %866 = vmatpush1.bf16.xpose.msra.mxu0 0
        %867 = vmatprep.subr.bf16.mxu0 0
        %868 = vmatpush1.bf16.xpose.msra.mxu0 0
        %869 = vmatprep.subr.bf16.mxu0 0
        %870 = vmatpush1.bf16.xpose.msra.mxu0 0
        %871 = vmatprep.subr.bf16.mxu0 0
        %872 = vmatpush1.bf16.xpose.msra.mxu0 0
        %873 = vmatprep.subr.bf16.mxu0 0
        %874 = vmatpush1.bf16.xpose.msra.mxu0 0
        %875 = vmatprep.subr.bf16.mxu0 0
        %876 = vmatpush1.bf16.xpose.msra.mxu0 0
        %877 = vmatprep.subr.bf16.mxu0 0
        %878 = vmatpush1.bf16.xpose.msra.mxu0 0
        %879 = vmatprep.subr.bf16.mxu0 0
        %880 = vmatpush1.bf16.xpose.msra.mxu0 0
        %881 = vmatprep.subr.bf16.mxu0 0
        %882 = vmatpush1.bf16.xpose.msra.mxu0 0
        %883 = vmatprep.subr.bf16.mxu0 0
        %884 = vmatpush1.bf16.xpose.msra.mxu0 0
        %885 = vmatprep.subr.bf16.mxu0 0
        %886 = vmatpush1.bf16.xpose.msra.mxu0 0
        %887 = vmatprep.subr.bf16.mxu0 0
        %888 = vmatpush1.bf16.xpose.msra.mxu0 0
        %889 = vmatprep.mubr.bf16.mxu0 0
        %890 = vmatmul.mubr.bf16.gmra.mrb[0].mxu0 %v852
        %v891 = vpop.f32.mrb[0].mxu0
        %v892 = vadd.f32 0.0, %v891
        %v893 = vpop.f32.mrb[0].mxu0
        %v894 = vpop.f32.mrb[0].mxu0
        %v895 = vpop.f32.mrb[0].mxu0
        %896 = vdwg.mxu0
        %v898 = vsel %vm758, %v453, 0
        %v901 = vsel %vm758, %v605, 0
        %903 = vmatprep.subr.bf16.mxu0 0
        %904 = vmatpush1.bf16.xpose.msra.mxu0 %v901
        %905 = vmatprep.subr.bf16.mxu0 0
        %906 = vmatpush1.bf16.xpose.msra.mxu0 0
        %907 = vmatprep.subr.bf16.mxu0 0
        %908 = vmatpush1.bf16.xpose.msra.mxu0 0
        %909 = vmatprep.subr.bf16.mxu0 0
        %910 = vmatpush1.bf16.xpose.msra.mxu0 0
        %911 = vmatprep.subr.bf16.mxu0 0
        %912 = vmatpush1.bf16.xpose.msra.mxu0 0
        %913 = vmatprep.subr.bf16.mxu0 0
        %914 = vmatpush1.bf16.xpose.msra.mxu0 0
        %915 = vmatprep.subr.bf16.mxu0 0
        %916 = vmatpush1.bf16.xpose.msra.mxu0 0
        %917 = vmatprep.subr.bf16.mxu0 0
        %918 = vmatpush1.bf16.xpose.msra.mxu0 0
        %919 = vmatprep.subr.bf16.mxu0 0
        %920 = vmatpush1.bf16.xpose.msra.mxu0 0
        %921 = vmatprep.subr.bf16.mxu0 0
        %922 = vmatpush1.bf16.xpose.msra.mxu0 0
        %923 = vmatprep.subr.bf16.mxu0 0
        %924 = vmatpush1.bf16.xpose.msra.mxu0 0
        %925 = vmatprep.subr.bf16.mxu0 0
        %926 = vmatpush1.bf16.xpose.msra.mxu0 0
        %927 = vmatprep.subr.bf16.mxu0 0
        %928 = vmatpush1.bf16.xpose.msra.mxu0 0
        %929 = vmatprep.subr.bf16.mxu0 0
        %930 = vmatpush1.bf16.xpose.msra.mxu0 0
        %931 = vmatprep.subr.bf16.mxu0 0
        %932 = vmatpush1.bf16.xpose.msra.mxu0 0
        %933 = vmatprep.subr.bf16.mxu0 0
        %934 = vmatpush1.bf16.xpose.msra.mxu0 0
        %935 = vmatprep.mubr.bf16.mxu0 0
        %936 = vmatmul.mubr.bf16.gmra.mrb[0].mxu0 %v898
        %v937 = vpop.f32.mrb[0].mxu0
        %v938 = vadd.f32 0.0, %v937
        %v939 = vpop.f32.mrb[0].mxu0
        %v940 = vpop.f32.mrb[0].mxu0
        %v941 = vpop.f32.mrb[0].mxu0
        %942 = vdwg.mxu0
        %v943 = vsel %vm758, %v800, -inf
        %944 = vmax.xlane.f32.xlu0 %v943
        %v945 = vpop.xlane.xlu0 %944
        %v946 = vsel %vm758, %v846, -inf
        %947 = vmax.xlane.f32.xlu0 %v946
        %v948 = vpop.xlane.xlu0 %947
        %v949 = vsel %vm758, %v892, -inf
        %950 = vmax.xlane.f32.xlu0 %v949
        %v951 = vpop.xlane.xlu0 %950
        %v952 = vsel %vm758, %v938, -inf
        %953 = vmax.xlane.f32.xlu0 %v952
        %v954 = vpop.xlane.xlu0 %953
        %v955 = vsub.f32 %v800, %v945
        %v956 = vsub.f32 %v846, %v948
        %v957 = vsub.f32 %v892, %v951
        %v958 = vsub.f32 %v938, %v954
        %v959 = vmul.f32 %v955, 1.442695
        %v960 = vpow.pop %v959
        %v961 = vmul.f32 %v956, 1.442695
        %v962 = vpow.pop %v961
        %v963 = vmul.f32 %v957, 1.442695
        %v964 = vpow.pop %v963
        %v965 = vmul.f32 %v958, 1.442695
        %v966 = vpow.pop %v965
        %v967 = vsel %vm758, %v960, 0.0
        %968 = vadd.xlane.f32.xlu0 %v967
        %v969 = vpop.xlane.xlu0 %968
        %v970 = vsel %vm758, %v962, 0.0
        %971 = vadd.xlane.f32.xlu0 %v970
        %v972 = vpop.xlane.xlu0 %971
        %v973 = vsel %vm758, %v964, 0.0
        %974 = vadd.xlane.f32.xlu0 %v973
        %v975 = vpop.xlane.xlu0 %974
        %v976 = vsel %vm758, %v966, 0.0
        %977 = vadd.xlane.f32.xlu0 %v976
        %v978 = vpop.xlane.xlu0 %977
        %v979 = vrcp.pop %v969
        %v980 = vmul.f32 %v960, %v979
        %v981 = vrcp.pop %v972
        %v982 = vmul.f32 %v962, %v981
        %v983 = vrcp.pop %v975
        %v984 = vmul.f32 %v964, %v983
        %v985 = vrcp.pop %v978
        %v986 = vmul.f32 %v966, %v985
        %v987 = vpack.c.bf16 %v980, %v980
        %v988 = vpack.c.bf16 %v982, %v982
        %v989 = vpack.c.bf16 %v984, %v984
        %v990 = vpack.c.bf16 %v986, %v986
        %v992 = vsel %vm758, %v987, 0
        %vm994 = vcmask 1043456
        %v996 = vsel %vm994, %v754, 0
        %998 = vmatprep.subr.bf16.mxu0 0
        %999 = vmatpush1.bf16.msra.mxu0 %v996
        %1000 = vmatprep.subr.bf16.mxu0 0
        %1001 = vmatpush1.bf16.msra.mxu0 0
        %1002 = vmatprep.subr.bf16.mxu0 0
        %1003 = vmatpush1.bf16.msra.mxu0 0
        %1004 = vmatprep.subr.bf16.mxu0 0
        %1005 = vmatpush1.bf16.msra.mxu0 0
        %1006 = vmatprep.subr.bf16.mxu0 0
        %1007 = vmatpush1.bf16.msra.mxu0 0
        %1008 = vmatprep.subr.bf16.mxu0 0
        %1009 = vmatpush1.bf16.msra.mxu0 0
        %1010 = vmatprep.subr.bf16.mxu0 0
        %1011 = vmatpush1.bf16.msra.mxu0 0
        %1012 = vmatprep.subr.bf16.mxu0 0
        %1013 = vmatpush1.bf16.msra.mxu0 0
        %1014 = vmatprep.subr.bf16.mxu0 0
        %1015 = vmatpush1.bf16.msra.mxu0 0
        %1016 = vmatprep.subr.bf16.mxu0 0
        %1017 = vmatpush1.bf16.msra.mxu0 0
        %1018 = vmatprep.subr.bf16.mxu0 0
        %1019 = vmatpush1.bf16.msra.mxu0 0
        %1020 = vmatprep.subr.bf16.mxu0 0
        %1021 = vmatpush1.bf16.msra.mxu0 0
        %1022 = vmatprep.subr.bf16.mxu0 0
        %1023 = vmatpush1.bf16.msra.mxu0 0
        %1024 = vmatprep.subr.bf16.mxu0 0
        %1025 = vmatpush1.bf16.msra.mxu0 0
        %1026 = vmatprep.subr.bf16.mxu0 0
        %1027 = vmatpush1.bf16.msra.mxu0 0
        %1028 = vmatprep.subr.bf16.mxu0 0
        %1029 = vmatpush1.bf16.msra.mxu0 0
        %1030 = vmatprep.mubr.bf16.mxu0 0
        %1031 = vmatmul.mubr.bf16.gmra.mrb[0].mxu0 %v992
        %v1032 = vpop.f32.mrb[0].mxu0
        %v1033 = vadd.f32 0.0, %v1032
        %v1034 = vpop.f32.mrb[0].mxu0
        %v1035 = vpop.f32.mrb[0].mxu0
        %v1036 = vpop.f32.mrb[0].mxu0
        %1037 = vdwg.mxu0
        %v1039 = vsel %vm758, %v988, 0
        %v1042 = vsel %vm994, %v755, 0
        %1044 = vmatprep.subr.bf16.mxu0 0
        %1045 = vmatpush1.bf16.msra.mxu0 %v1042
        %1046 = vmatprep.subr.bf16.mxu0 0
        %1047 = vmatpush1.bf16.msra.mxu0 0
        %1048 = vmatprep.subr.bf16.mxu0 0
        %1049 = vmatpush1.bf16.msra.mxu0 0
        %1050 = vmatprep.subr.bf16.mxu0 0
        %1051 = vmatpush1.bf16.msra.mxu0 0
        %1052 = vmatprep.subr.bf16.mxu0 0
        %1053 = vmatpush1.bf16.msra.mxu0 0
        %1054 = vmatprep.subr.bf16.mxu0 0
        %1055 = vmatpush1.bf16.msra.mxu0 0
        %1056 = vmatprep.subr.bf16.mxu0 0
        %1057 = vmatpush1.bf16.msra.mxu0 0
        %1058 = vmatprep.subr.bf16.mxu0 0
        %1059 = vmatpush1.bf16.msra.mxu0 0
        %1060 = vmatprep.subr.bf16.mxu0 0
        %1061 = vmatpush1.bf16.msra.mxu0 0
        %1062 = vmatprep.subr.bf16.mxu0 0
        %1063 = vmatpush1.bf16.msra.mxu0 0
        %1064 = vmatprep.subr.bf16.mxu0 0
        %1065 = vmatpush1.bf16.msra.mxu0 0
        %1066 = vmatprep.subr.bf16.mxu0 0
        %1067 = vmatpush1.bf16.msra.mxu0 0
        %1068 = vmatprep.subr.bf16.mxu0 0
        %1069 = vmatpush1.bf16.msra.mxu0 0
        %1070 = vmatprep.subr.bf16.mxu0 0
        %1071 = vmatpush1.bf16.msra.mxu0 0
        %1072 = vmatprep.subr.bf16.mxu0 0
        %1073 = vmatpush1.bf16.msra.mxu0 0
        %1074 = vmatprep.subr.bf16.mxu0 0
        %1075 = vmatpush1.bf16.msra.mxu0 0
        %1076 = vmatprep.mubr.bf16.mxu0 0
        %1077 = vmatmul.mubr.bf16.gmra.mrb[0].mxu0 %v1039
        %v1078 = vpop.f32.mrb[0].mxu0
        %v1079 = vadd.f32 0.0, %v1078
        %v1080 = vpop.f32.mrb[0].mxu0
        %v1081 = vpop.f32.mrb[0].mxu0
        %v1082 = vpop.f32.mrb[0].mxu0
        %1083 = vdwg.mxu0
        %v1085 = vsel %vm758, %v989, 0
        %v1088 = vsel %vm994, %v756, 0
        %1090 = vmatprep.subr.bf16.mxu0 0
        %1091 = vmatpush1.bf16.msra.mxu0 %v1088
        %1092 = vmatprep.subr.bf16.mxu0 0
        %1093 = vmatpush1.bf16.msra.mxu0 0
        %1094 = vmatprep.subr.bf16.mxu0 0
        %1095 = vmatpush1.bf16.msra.mxu0 0
        %1096 = vmatprep.subr.bf16.mxu0 0
        %1097 = vmatpush1.bf16.msra.mxu0 0
        %1098 = vmatprep.subr.bf16.mxu0 0
        %1099 = vmatpush1.bf16.msra.mxu0 0
        %1100 = vmatprep.subr.bf16.mxu0 0
        %1101 = vmatpush1.bf16.msra.mxu0 0
        %1102 = vmatprep.subr.bf16.mxu0 0
        %1103 = vmatpush1.bf16.msra.mxu0 0
        %1104 = vmatprep.subr.bf16.mxu0 0
        %1105 = vmatpush1.bf16.msra.mxu0 0
        %1106 = vmatprep.subr.bf16.mxu0 0
        %1107 = vmatpush1.bf16.msra.mxu0 0
        %1108 = vmatprep.subr.bf16.mxu0 0
        %1109 = vmatpush1.bf16.msra.mxu0 0
        %1110 = vmatprep.subr.bf16.mxu0 0
        %1111 = vmatpush1.bf16.msra.mxu0 0
        %1112 = vmatprep.subr.bf16.mxu0 0
        %1113 = vmatpush1.bf16.msra.mxu0 0
        %1114 = vmatprep.subr.bf16.mxu0 0
        %1115 = vmatpush1.bf16.msra.mxu0 0
        %1116 = vmatprep.subr.bf16.mxu0 0
        %1117 = vmatpush1.bf16.msra.mxu0 0
        %1118 = vmatprep.subr.bf16.mxu0 0
        %1119 = vmatpush1.bf16.msra.mxu0 0
        %1120 = vmatprep.subr.bf16.mxu0 0
        %1121 = vmatpush1.bf16.msra.mxu0 0
        %1122 = vmatprep.mubr.bf16.mxu0 0
        %1123 = vmatmul.mubr.bf16.gmra.mrb[0].mxu0 %v1085
        %v1124 = vpop.f32.mrb[0].mxu0
        %v1125 = vadd.f32 0.0, %v1124
        %v1126 = vpop.f32.mrb[0].mxu0
        %v1127 = vpop.f32.mrb[0].mxu0
        %v1128 = vpop.f32.mrb[0].mxu0
        %1129 = vdwg.mxu0
        %v1131 = vsel %vm758, %v990, 0
        %v1134 = vsel %vm994, %v757, 0
        %1136 = vmatprep.subr.bf16.mxu0 0
        %1137 = vmatpush1.bf16.msra.mxu0 %v1134
        %1138 = vmatprep.subr.bf16.mxu0 0
        %1139 = vmatpush1.bf16.msra.mxu0 0
        %1140 = vmatprep.subr.bf16.mxu0 0
        %1141 = vmatpush1.bf16.msra.mxu0 0
        %1142 = vmatprep.subr.bf16.mxu0 0
        %1143 = vmatpush1.bf16.msra.mxu0 0
        %1144 = vmatprep.subr.bf16.mxu0 0
        %1145 = vmatpush1.bf16.msra.mxu0 0
        %1146 = vmatprep.subr.bf16.mxu0 0
        %1147 = vmatpush1.bf16.msra.mxu0 0
        %1148 = vmatprep.subr.bf16.mxu0 0
        %1149 = vmatpush1.bf16.msra.mxu0 0
        %1150 = vmatprep.subr.bf16.mxu0 0
        %1151 = vmatpush1.bf16.msra.mxu0 0
        %1152 = vmatprep.subr.bf16.mxu0 0
        %1153 = vmatpush1.bf16.msra.mxu0 0
        %1154 = vmatprep.subr.bf16.mxu0 0
        %1155 = vmatpush1.bf16.msra.mxu0 0
        %1156 = vmatprep.subr.bf16.mxu0 0
        %1157 = vmatpush1.bf16.msra.mxu0 0
        %1158 = vmatprep.subr.bf16.mxu0 0
        %1159 = vmatpush1.bf16.msra.mxu0 0
        %1160 = vmatprep.subr.bf16.mxu0 0
        %1161 = vmatpush1.bf16.msra.mxu0 0
        %1162 = vmatprep.subr.bf16.mxu0 0
        %1163 = vmatpush1.bf16.msra.mxu0 0
        %1164 = vmatprep.subr.bf16.mxu0 0
        %1165 = vmatpush1.bf16.msra.mxu0 0
        %1166 = vmatprep.subr.bf16.mxu0 0
        %1167 = vmatpush1.bf16.msra.mxu0 0
        %1168 = vmatprep.mubr.bf16.mxu0 0
        %1169 = vmatmul.mubr.bf16.gmra.mrb[0].mxu0 %v1131
        %v1170 = vpop.f32.mrb[0].mxu0
        %v1171 = vadd.f32 0.0, %v1170
        %v1172 = vpop.f32.mrb[0].mxu0
        %v1173 = vpop.f32.mrb[0].mxu0
        %v1174 = vpop.f32.mrb[0].mxu0
        %1175 = vdwg.mxu0
        %v1176 = vcombine.low %v1033, %v1125
        %v1177 = vcombine.high %v1033, %v1125
        %v1179 = vunpack.c.l.s4 1983009808
        %v1180 = vunpack.c.0.s8 %v1179
        %v1181 = vlaneseq
        %v1182 = vshrl.u32 %v1181, 7
        %v1183 = vsub.s32 %v1180, %v1182
        %v1184 = vrot.slane %v1176, %v1183
        %v1186 = vunpack.c.l.s4 1983009808
        %v1187 = vunpack.c.0.s8 %v1186
        %v1188 = vlaneseq
        %v1189 = vshrl.u32 %v1188, 7
        %v1190 = vsub.s32 %v1187, %v1189
        %v1191 = vrot.slane %v1177, %v1190
        %v1192 = vcombine.low %v1079, %v1171
        %v1193 = vcombine.high %v1079, %v1171
        %v1195 = vunpack.c.l.s4 1983009808
        %v1196 = vunpack.c.0.s8 %v1195
        %v1197 = vlaneseq
        %v1198 = vshrl.u32 %v1197, 7
        %v1199 = vsub.s32 %v1196, %v1198
        %v1200 = vrot.slane %v1192, %v1199
        %v1202 = vunpack.c.l.s4 1983009808
        %v1203 = vunpack.c.0.s8 %v1202
        %v1204 = vlaneseq
        %v1205 = vshrl.u32 %v1204, 7
        %v1206 = vsub.s32 %v1203, %v1205
        %v1207 = vrot.slane %v1193, %v1206
        %v1208 = vcombine.low %v1184, %v1200
        %v1209 = vcombine.high %v1184, %v1200
        %v1211 = vunpack.c.l.s4 1934713408
        %v1212 = vunpack.c.0.s8 %v1211
        %v1213 = vlaneseq
        %v1214 = vshrl.u32 %v1213, 7
        %v1215 = vsub.s32 %v1212, %v1214
        %v1216 = vrot.slane %v1208, %v1215
        %v1218 = vunpack.c.l.s4 1934713408
        %v1219 = vunpack.c.0.s8 %v1218
        %v1220 = vlaneseq
        %v1221 = vshrl.u32 %v1220, 7
        %v1222 = vsub.s32 %v1219, %v1221
        %v1223 = vrot.slane %v1209, %v1222
        %v1224 = vcombine.low %v1191, %v1207
        %v1225 = vcombine.high %v1191, %v1207
        %v1227 = vunpack.c.l.s4 1934713408
        %v1228 = vunpack.c.0.s8 %v1227
        %v1229 = vlaneseq
        %v1230 = vshrl.u32 %v1229, 7
        %v1231 = vsub.s32 %v1228, %v1230
        %v1232 = vrot.slane %v1224, %v1231
        %v1234 = vunpack.c.l.s4 1934713408
        %v1235 = vunpack.c.0.s8 %v1234
        %v1236 = vlaneseq
        %v1237 = vshrl.u32 %v1236, 7
        %v1238 = vsub.s32 %v1235, %v1237
        %v1239 = vrot.slane %v1225, %v1238
        %v1240 = vcombine.high %v1216, 0.0
        %v1241 = vcombine.high %v1223, 0.0
        %v1242 = vcombine.high %v1232, 0.0
        %v1243 = vcombine.high %v1239, 0.0
        %v1244 = vcombine.low %v1216, %v1223
        %v1246 = vunpack.c.l.s4 1983009808
        %v1247 = vunpack.c.0.s8 %v1246
        %v1248 = vlaneseq
        %v1249 = vshrl.u32 %v1248, 7
        %v1250 = vsub.s32 %v1247, %v1249
        %v1251 = vrot.slane %v1244, %v1250
        %v1252 = vcombine.low %v1240, %v1241
        %v1254 = vunpack.c.l.s4 1983009808
        %v1255 = vunpack.c.0.s8 %v1254
        %v1256 = vlaneseq
        %v1257 = vshrl.u32 %v1256, 7
        %v1258 = vsub.s32 %v1255, %v1257
        %v1259 = vrot.slane %v1252, %v1258
        %v1260 = vcombine.low %v1232, %v1239
        %v1262 = vunpack.c.l.s4 1983009808
        %v1263 = vunpack.c.0.s8 %v1262
        %v1264 = vlaneseq
        %v1265 = vshrl.u32 %v1264, 7
        %v1266 = vsub.s32 %v1263, %v1265
        %v1267 = vrot.slane %v1260, %v1266
        %v1268 = vcombine.low %v1242, %v1243
        %v1270 = vunpack.c.l.s4 1983009808
        %v1271 = vunpack.c.0.s8 %v1270
        %v1272 = vlaneseq
        %v1273 = vshrl.u32 %v1272, 7
        %v1274 = vsub.s32 %v1271, %v1273
        %v1275 = vrot.slane %v1268, %v1274
        %v1276 = vcombine.low %v1251, %v1259
        %v1277 = vcombine.high %v1251, %v1259
        %v1279 = vunpack.c.l.s4 1934713408
        %v1280 = vunpack.c.0.s8 %v1279
        %v1281 = vlaneseq
        %v1282 = vshrl.u32 %v1281, 7
        %v1283 = vsub.s32 %v1280, %v1282
        %v1284 = vrot.slane %v1276, %v1283
        %v1286 = vunpack.c.l.s4 1934713408
        %v1287 = vunpack.c.0.s8 %v1286
        %v1288 = vlaneseq
        %v1289 = vshrl.u32 %v1288, 7
        %v1290 = vsub.s32 %v1287, %v1289
        %v1291 = vrot.slane %v1277, %v1290
        %v1292 = vcombine.low %v1267, %v1275
        %v1293 = vcombine.high %v1267, %v1275
        %v1295 = vunpack.c.l.s4 1934713408
        %v1296 = vunpack.c.0.s8 %v1295
        %v1297 = vlaneseq
        %v1298 = vshrl.u32 %v1297, 7
        %v1299 = vsub.s32 %v1296, %v1298
        %v1300 = vrot.slane %v1292, %v1299
        %v1302 = vunpack.c.l.s4 1934713408
        %v1303 = vunpack.c.0.s8 %v1302
        %v1304 = vlaneseq
        %v1305 = vshrl.u32 %v1304, 7
        %v1306 = vsub.s32 %v1303, %v1305
        %v1307 = vrot.slane %v1293, %v1306
        %v1308 = vcombine.low %v1284, %v1300
        %v1309 = vcombine.high %v1284, %v1300
        %v1310 = vcombine.low %v1291, %v1307
        %v1311 = vcombine.high %v1291, %v1307
        %1313 = vrot.lane.b32.xlu0 %v1309, 8
        %v1314 = vpop.permute.xlu0 %1313
        %1317 = vrot.lane.b32.xlu0 %v1310, 16
        %v1318 = vpop.permute.xlu0 %1317
        %1321 = vrot.lane.b32.xlu0 %v1311, 24
        %v1322 = vpop.permute.xlu0 %1321
        %v1324 = vsel %vm758, %v1308, %v1314
        %vm1325 = vcmask 130048
        %v1326 = vsel %vm1325, %v1324, %v1318
        %vm1327 = vcmask 195584
        %v1328 = vsel %vm1327, %v1326, %v1322
        %v1329 = vpack.c.bf16 %v1328, %v1328
        %v1330 = vld [vmem:[#allocation7] sm:$0xf]
        %v1331 = vld [vmem:[#allocation7 + $0x4] sm:$0xf]
        %v1332 = vld [vmem:[#allocation7 + $0x8] sm:$0xf]
        %v1333 = vld [vmem:[#allocation7 + $0xc] sm:$0xf]
        %v1334 = vld [vmem:[%s3] sm:$0x1]
        %v1336 = vlaneseq
        %v1337 = vshrl.u32 %v1336, 7
        %v1338 = vsub.s32 0, %v1337
        %v1339 = vrot.slane %v1334, %v1338
        %v1345 = vunpack.c.l.b16 %v1330
        %v1346 = vunpack.c.l.b16 %v1331
        %v1347 = vunpack.c.l.b16 %v1332
        %v1348 = vunpack.c.l.b16 %v1333
        %v1349 = vpack.c.b16 %v1346, %v1345
        %v1350 = vpack.c.b16 %v1348, %v1347
        %v1354 = vsel %vm260, %v1329, 0
        %1356 = vmatprep.subr.bf16.mxu0 0
        %1357 = vmatpush1.bf16.msra.mxu0 %v1349
        %1358 = vmatprep.subr.bf16.mxu0 0
        %1359 = vmatpush1.bf16.msra.mxu0 %v1350
        %1360 = vmatprep.subr.bf16.mxu0 0
        %1361 = vmatpush1.bf16.msra.mxu0 0
        %1362 = vmatprep.subr.bf16.mxu0 0
        %1363 = vmatpush1.bf16.msra.mxu0 0
        %1364 = vmatprep.subr.bf16.mxu0 0
        %1365 = vmatpush1.bf16.msra.mxu0 0
        %1366 = vmatprep.subr.bf16.mxu0 0
        %1367 = vmatpush1.bf16.msra.mxu0 0
        %1368 = vmatprep.subr.bf16.mxu0 0
        %1369 = vmatpush1.bf16.msra.mxu0 0
        %1370 = vmatprep.subr.bf16.mxu0 0
        %1371 = vmatpush1.bf16.msra.mxu0 0
        %1372 = vmatprep.subr.bf16.mxu0 0
        %1373 = vmatpush1.bf16.msra.mxu0 0
        %1374 = vmatprep.subr.bf16.mxu0 0
        %1375 = vmatpush1.bf16.msra.mxu0 0
        %1376 = vmatprep.subr.bf16.mxu0 0
        %1377 = vmatpush1.bf16.msra.mxu0 0
        %1378 = vmatprep.subr.bf16.mxu0 0
        %1379 = vmatpush1.bf16.msra.mxu0 0
        %1380 = vmatprep.subr.bf16.mxu0 0
        %1381 = vmatpush1.bf16.msra.mxu0 0
        %1382 = vmatprep.subr.bf16.mxu0 0
        %1383 = vmatpush1.bf16.msra.mxu0 0
        %1384 = vmatprep.subr.bf16.mxu0 0
        %1385 = vmatpush1.bf16.msra.mxu0 0
        %1386 = vmatprep.subr.bf16.mxu0 0
        %1387 = vmatpush1.bf16.msra.mxu0 0
        %1388 = vmatprep.mubr.bf16.mxu0 0
        %1389 = vmatmul.mubr.bf16.gmra.mrb[0].mxu0 %v1354
        %v1390 = vpop.f32.mrb[0].mxu0
        %v1391 = vadd.f32 %v1339, %v1390
        %v1392 = vpop.f32.mrb[0].mxu0
        %v1393 = vpop.f32.mrb[0].mxu0
        %v1394 = vpop.f32.mrb[0].mxu0
        %1395 = vdwg.mxu0
        %1396 = vst.msk [vmem:[%s241] sm:$0xff] %vm260, %v1391
        %s1397 = sand.u32 %s119, 1
        %s1398 = scalar_lea.sflag [#allocation4], %s1397
        %s1399 = sand.u32 %s119, 1
        %s1400 = smul.addr %s1399, 8
        %s1401 = scalar_lea.vmem [#allocation8], %s1400
        // Predicated region
        $region49: #{tpu_custom_call.1} parent=35 // pred_check
          %p1402 = pneg %p129
        $region50: #{tpu_custom_call.1} parent=35 // pred_check_branch
          %1404 = sbr.rel (%p1402) target = $region52
        $region51: #{tpu_custom_call.1} parent=35 // pred_region
          %s1406 = ssub.s32 128, 128
          %1407 = vsyncadd %s1398, %s1406
          %s1408 = smul.addr %s22, 128
          %s1409 = scalar_lea.hbm %s4, %s1408
          %s1411 = sshll.u32 %s1401, 4
          %s1412 = int_to_ptr.vmem [resolvable:$true] %s1411
          %1414 = dma.vmem_to_hbm [thread:$0]  %s1412, 128, %s1409, %s1398
        $region52: #{tpu_custom_call.1} parent=35 // pred_fallthru
          _
      $region36: #{tpu_custom_call.1} parent=5 // pred_fallthru
        _
      %p1415 = scmp.le.s32.totalorder 2, %s17
      // Predicated region
      $region53: #{tpu_custom_call.1} parent=5 // pred_check
        %p1416 = pneg %p1415
      $region54: #{tpu_custom_call.1} parent=5 // pred_check_branch
        %1418 = sbr.rel (%p1416) target = $region56
      $region55: #{tpu_custom_call.1} parent=5 // pred_region
        %s1419 = ssub.s32 %s17, 2
        // Predicated region
        $region57: #{tpu_custom_call.1} parent=55 // pred_check
          %p1420 = pneg %p135
        $region58: #{tpu_custom_call.1} parent=55 // pred_check_branch
          %1422 = sbr.rel (%p1420) target = $region60
        $region59: #{tpu_custom_call.1} parent=55 // pred_region
          %s1423 = sand.u32 %s120, 1
          %s1424 = scalar_lea.sflag [#allocation4], %s1423
          %s1425 = sand.u32 %s120, 1
          %s1426 = smul.addr %s1425, 8
          %s1427 = scalar_lea.vmem [#allocation8], %s1426
          %1428 = dma.done %s1424, 128
        $region60: #{tpu_custom_call.1} parent=55 // pred_fallthru
          _
      $region56: #{tpu_custom_call.1} parent=5 // pred_fallthru
        _
    $region6: #{tpu_custom_call.1} parent=1 // loop_footer
      %s21 = sadd.s32 1, %s17
    $region7: #{tpu_custom_call.1} parent=1 // loop_footer_branch
      %16 = sbr.rel target = $region3
    $region8: #{tpu_custom_call.1} parent=1 // loop_exit
      _
    %1429 = vsyncpa [#allocation3], 1
    %s1430 = scalar_lea.sflag [#allocation3], 1
    %1431 = vsyncpa %s1430, 1
    %1432 = vsyncpa [#allocation6], 1
    %1433 = vsyncpa [#allocation4], 1
    %s1434 = scalar_lea.sflag [#allocation4], 1
    %1435 = vsyncpa %s1434, 1

// kernel: tpu_custom_call.1
$region0: #{tpu_custom_call.1}
  #allocation0 [shape = 'u32[]', space=smem, size = 0x4, offset = 0x4, fixed_abs, tag = 'smem constant byte address 0x4 - core index']
  #allocation1 [shape = 'u32[144,128]{1,0:T(1,128)}', space=vmem, size = 0x12000, scoped, tag = 'internal scratch']
  %s0 = inlined_call_operand.hbm [shape: bf16[2,8,32], index: 0, kind: input, shape index: {}]
  %s1 = inlined_call_operand.hbm [shape: bf16[32,96], index: 1, kind: input, shape index: {}]
  %s2 = inlined_call_operand.hbm [shape: bf16[32,32], index: 2, kind: input, shape index: {}]
  %s3 = inlined_call_operand.vmem [shape: f32[1,32], index: 3, kind: input, shape index: {}]
  %s4 = inlined_call_operand.hbm [shape: f32[2,8,32], index: 4, kind: output, shape index: {}]
  %s5 = sld [smem:[#allocation0]]
  $region61: #{tpu_custom_call.1} parent=0
    _
  %s7 = ssub.s32 1, %s5
  %s8 = scalar_select 0, %s7, %s5
  $region1: #{tpu_custom_call.1} parent=0
    #allocation2 [shape = 'u8[4096]{0}', space=vmem, size = 0x1000, scoped, tag = 'input window, operand 0']
    #allocation3 [shape = 's32[2]{0}', space=sflag, size = 0x8, scoped, tag = 'scoped memory for tpu_custom_call.1']
    #allocation4 [shape = 's32[2]{0}', space=sflag, size = 0x8, scoped, tag = 'scoped memory for tpu_custom_call.1']
    #allocation5 [shape = 'u8[8192]{0}', space=vmem, size = 0x2000, scoped, tag = 'input window, operand 1, single buffered']
    #allocation6 [shape = 's32[1]{0}', space=sflag, size = 0x4, scoped, tag = 'scoped memory for tpu_custom_call.1']
    #allocation7 [shape = 'u8[8192]{0}', space=vmem, size = 0x2000, scoped, tag = 'input window, operand 2, single buffered']
    #allocation8 [shape = 'u8[8192]{0}', space=vmem, size = 0x2000, scoped, tag = 'output window, operand 0']
    %9 = vsyncpa [#allocation3], 0
    %s10 = scalar_lea.sflag [#allocation3], 1
    %11 = vsyncpa %s10, 0
    %12 = vsyncpa [#allocation6], 0
    %13 = vsyncpa [#allocation4], 0
    %s14 = scalar_lea.sflag [#allocation4], 1
    %15 = vsyncpa %s14, 0
    loop: start=0, step=1, limit=4
    $region2: #{tpu_custom_call.1} parent=1 // loop_pre_header
      _
    $region3: #{tpu_custom_call.1} parent=1 // loop_header
      %s17 = sphi 0, %s21
      %p18 = scmp.ge.s32.totalorder %s17, 4
      %s27 = sphi 0, %s29
      %s30 = sphi 0, %s27
      %s31 = sphi 0, %s30
      %s47 = sphi 0, %s31
      %s51 = sphi 0, %s51
      %s53 = sphi 0, %s51
      %s54 = sphi 0, %s53
      %s68 = sphi 0, %s54
      %s72 = sphi 0, %s72
      %s74 = sphi 0, %s72
      %s75 = sphi 0, %s74
      %s89 = sphi 0, %s75
      %s93 = sphi 0, %s93
      %s95 = sphi 0, %s93
      %s96 = sphi 0, %s95
      %s110 = sphi 0, %s96
      %s116 = sphi 0, %s118
      %s119 = sphi 0, %s116
      %s120 = sphi 0, %s119
      %s136 = sphi 0, %s120
    $region4: #{tpu_custom_call.1} parent=1 // loop_header_branch
      %20 = sbr.rel (%p18) target = $region8
    $region5: #{tpu_custom_call.1} parent=1 // loop_body
      %s22 = ssub.s32 %s17, 1
      %s23 = ssub.s32 %s17, 2
      %s24 = sadd.s32 %s17, 1
      %s25 = ssub.s32 %s17, %s24
      %p26 = scmp.eq.s32.totalorder %s25, 0
      %s28 = sadd.s32 %s27, 1
      %s29 = scalar_select %p26, %s27, %s28
      %p32 = pneg %p26
      %p33 = scmp.eq.s32.totalorder %s17, 1
      %p34 = por %p32, %p33
      %p35 = scmp.ne.s32.totalorder %s27, %s30
      %p36 = scmp.eq.s32.totalorder %s17, 0
      %p37 = por %p35, %p36
      %p38 = scmp.ne.s32.totalorder %s27, %s30
      %p39 = scmp.eq.s32.totalorder %s22, 1
      %p40 = por %p38, %p39
      %p41 = scmp.ne.s32.totalorder %s30, %s31
      %p42 = scmp.eq.s32.totalorder %s22, 0
      %p43 = por %p41, %p42
      %p44 = scmp.ne.s32.totalorder %s30, %s31
      %p45 = scmp.eq.s32.totalorder %s23, 1
      %p46 = por %p44, %p45
      %p48 = scmp.ne.s32.totalorder %s31, %s47
      %p49 = scmp.eq.s32.totalorder %s23, 0
      %p50 = por %p48, %p49
      %s52 = sadd.s32 %s51, 1
      %p55 = scmp.eq.s32.totalorder %s17, 1
      %p56 = scmp.ne.s32.totalorder %s51, %s53
      %p57 = scmp.eq.s32.totalorder %s17, 0
      %p58 = por %p56, %p57
      %p59 = scmp.ne.s32.totalorder %s51, %s53
      %p60 = scmp.eq.s32.totalorder %s22, 1
      %p61 = por %p59, %p60
      %p62 = scmp.ne.s32.totalorder %s53, %s54
      %p63 = scmp.eq.s32.totalorder %s22, 0
      %p64 = por %p62, %p63
      %p65 = scmp.ne.s32.totalorder %s53, %s54
      %p66 = scmp.eq.s32.totalorder %s23, 1
      %p67 = por %p65, %p66
      %p69 = scmp.ne.s32.totalorder %s54, %s68
      %p70 = scmp.eq.s32.totalorder %s23, 0
      %p71 = por %p69, %p70
      %s73 = sadd.s32 %s72, 1
      %p76 = scmp.eq.s32.totalorder %s17, 1
      %p77 = scmp.ne.s32.totalorder %s72, %s74
      %p78 = scmp.eq.s32.totalorder %s17, 0
      %p79 = por %p77, %p78
      %p80 = scmp.ne.s32.totalorder %s72, %s74
      %p81 = scmp.eq.s32.totalorder %s22, 1
      %p82 = por %p80, %p81
      %p83 = scmp.ne.s32.totalorder %s74, %s75
      %p84 = scmp.eq.s32.totalorder %s22, 0
      %p85 = por %p83, %p84
      %p86 = scmp.ne.s32.totalorder %s74, %s75
      %p87 = scmp.eq.s32.totalorder %s23, 1
      %p88 = por %p86, %p87
      %p90 = scmp.ne.s32.totalorder %s75, %s89
      %p91 = scmp.eq.s32.totalorder %s23, 0
      %p92 = por %p90, %p91
      %s94 = sadd.s32 %s93, 1
      %p97 = scmp.eq.s32.totalorder %s17, 1
      %p98 = scmp.ne.s32.totalorder %s93, %s95
      %p99 = scmp.eq.s32.totalorder %s17, 0
      %p100 = por %p98, %p99
      %p101 = scmp.ne.s32.totalorder %s93, %s95
      %p102 = scmp.eq.s32.totalorder %s22, 1
      %p103 = por %p101, %p102
      %p104 = scmp.ne.s32.totalorder %s95, %s96
      %p105 = scmp.eq.s32.totalorder %s22, 0
      %p106 = por %p104, %p105
      %p107 = scmp.ne.s32.totalorder %s95, %s96
      %p108 = scmp.eq.s32.totalorder %s23, 1
      %p109 = por %p107, %p108
      %p111 = scmp.ne.s32.totalorder %s96, %s110
      %p112 = scmp.eq.s32.totalorder %s23, 0
      %p113 = por %p111, %p112
      %s114 = ssub.s32 %s17, %s24
      %p115 = scmp.eq.s32.totalorder %s114, 0
      %s117 = sadd.s32 %s116, 1
      %s118 = scalar_select %p115, %s116, %s117
      %p121 = pneg %p115
      %p122 = scmp.eq.s32.totalorder %s17, 1
      %p123 = por %p121, %p122
      %p124 = scmp.ne.s32.totalorder %s116, %s119
      %p125 = scmp.eq.s32.totalorder %s17, 0
      %p126 = por %p124, %p125
      %p127 = scmp.ne.s32.totalorder %s116, %s119
      %p128 = scmp.eq.s32.totalorder %s22, 1
      %p129 = por %p127, %p128
      %p130 = scmp.ne.s32.totalorder %s119, %s120
      %p131 = scmp.eq.s32.totalorder %s22, 0
      %p132 = por %p130, %p131
      %p133 = scmp.ne.s32.totalorder %s119, %s120
      %p134 = scmp.eq.s32.totalorder %s23, 1
      %p135 = por %p133, %p134
      %p137 = scmp.ne.s32.totalorder %s120, %s136
      %p138 = scmp.eq.s32.totalorder %s23, 0
      %p139 = por %p137, %p138
      %p140 = scmp.le.s32.totalorder 1, %s17
      %p141 = scmp.lt.s32.totalorder %s17, 3
      %p142 = pnand %p140, %p141
      %p143 = pneg %p142
      // Predicated region
      $region9: #{tpu_custom_call.1} parent=5 // pred_check
        _
      $region10: #{tpu_custom_call.1} parent=5 // pred_check_branch
        %145 = sbr.rel (%p142) target = $region12
      $region11: #{tpu_custom_call.1} parent=5 // pred_region
        %s146 = ssub.s32 %s17, 1
        // Predicated region
        $region13: #{tpu_custom_call.1} parent=11 // pred_check
          %p147 = pneg %p64
        $region14: #{tpu_custom_call.1} parent=11 // pred_check_branch
          %149 = sbr.rel (%p147) target = $region16
        $region15: #{tpu_custom_call.1} parent=11 // pred_region
          %s151 = ssub.s32 256, 256
          %152 = vsyncadd [#allocation6], %s151
          %s153 = sshll.u32 [#allocation5], 4
          %s154 = int_to_ptr.vmem [resolvable:$true] %s153
          %159 = dma.hbm_to_vmem [thread:$0]  %s1, 256, %s154, [#allocation6], 64, 64, 4
        $region16: #{tpu_custom_call.1} parent=11 // pred_fallthru
          _
        // Predicated region
        $region17: #{tpu_custom_call.1} parent=11 // pred_check
          %p160 = pneg %p85
        $region18: #{tpu_custom_call.1} parent=11 // pred_check_branch
          %162 = sbr.rel (%p160) target = $region20
        $region19: #{tpu_custom_call.1} parent=11 // pred_region
          %s164 = ssub.s32 256, 256
          %165 = vsyncadd [#allocation6], %s164
          %s166 = sshll.u32 [#allocation7], 4
          %s167 = int_to_ptr.vmem [resolvable:$true] %s166
          %172 = dma.hbm_to_vmem [thread:$0]  %s2, 256, %s167, [#allocation6], 64, 64, 4
        $region20: #{tpu_custom_call.1} parent=11 // pred_fallthru
          _
        // Predicated region
        $region21: #{tpu_custom_call.1} parent=11 // pred_check
          %p173 = pneg %p106
        $region22: #{tpu_custom_call.1} parent=11 // pred_check_branch
          %175 = sbr.rel (%p173) target = $region24
        $region23: #{tpu_custom_call.1} parent=11 // pred_region
          _
        $region24: #{tpu_custom_call.1} parent=11 // pred_fallthru
          _
      $region12: #{tpu_custom_call.1} parent=5 // pred_fallthru
        _
      %p176 = scmp.lt.s32.totalorder %s17, 2
      // Predicated region
      $region25: #{tpu_custom_call.1} parent=5 // pred_check
        %p177 = pneg %p176
      $region26: #{tpu_custom_call.1} parent=5 // pred_check_branch
        %179 = sbr.rel (%p177) target = $region28
      $region27: #{tpu_custom_call.1} parent=5 // pred_region
        // Predicated region
        $region29: #{tpu_custom_call.1} parent=27 // pred_check
          %p180 = pneg %p37
        $region30: #{tpu_custom_call.1} parent=27 // pred_check_branch
          %182 = sbr.rel (%p180) target = $region32
        $region31: #{tpu_custom_call.1} parent=27 // pred_region
          %s183 = sand.u32 %s27, 1
          %s184 = scalar_lea.sflag [#allocation3], %s183
          %s185 = sand.u32 %s27, 1
          %s186 = smul.addr %s185, 4
          %s187 = scalar_lea.vmem [#allocation2], %s186
          %s189 = ssub.s32 64, 64
          %190 = vsyncadd %s184, %s189
          %s191 = smul.addr %s17, 64
          %s192 = scalar_lea.hbm %s0, %s191
          %s194 = sshll.u32 %s187, 4
          %s195 = int_to_ptr.vmem [resolvable:$true] %s194
          %197 = dma.hbm_to_vmem [thread:$0]  %s192, 64, %s195, %s184
        $region32: #{tpu_custom_call.1} parent=27 // pred_fallthru
          _
      $region28: #{tpu_custom_call.1} parent=5 // pred_fallthru
        _
      %p198 = scmp.le.s32.totalorder 1, %s17
      %p199 = scmp.lt.s32.totalorder %s17, 3
      %p200 = pnand %p198, %p199
      %p201 = pneg %p200
      // Predicated region
      $region33: #{tpu_custom_call.1} parent=5 // pred_check
        _
      $region34: #{tpu_custom_call.1} parent=5 // pred_check_branch
        %203 = sbr.rel (%p200) target = $region36
      $region35: #{tpu_custom_call.1} parent=5 // pred_region
        %s204 = ssub.s32 %s17, 1
        %s205 = sand.u32 %s30, 1
        %s206 = scalar_lea.sflag [#allocation3], %s205
        %s207 = sand.u32 %s30, 1
        %s208 = smul.addr %s207, 4
        %s209 = scalar_lea.vmem [#allocation2], %s208
        // Predicated region
        $region37: #{tpu_custom_call.1} parent=35 // pred_check
          %p210 = pneg %p43
        $region38: #{tpu_custom_call.1} parent=35 // pred_check_branch
          %212 = sbr.rel (%p210) target = $region40
        $region39: #{tpu_custom_call.1} parent=35 // pred_region
          %213 = dma.done %s206, 64
        $region40: #{tpu_custom_call.1} parent=35 // pred_fallthru
          _
        // Predicated region
        $region41: #{tpu_custom_call.1} parent=35 // pred_check
          %p214 = pneg %p64
        $region42: #{tpu_custom_call.1} parent=35 // pred_check_branch
          %216 = sbr.rel (%p214) target = $region44
        $region43: #{tpu_custom_call.1} parent=35 // pred_region
          %217 = dma.done [#allocation6], 256
        $region44: #{tpu_custom_call.1} parent=35 // pred_fallthru
          _
        // Predicated region
        $region45: #{tpu_custom_call.1} parent=35 // pred_check
          %p218 = pneg %p85
        $region46: #{tpu_custom_call.1} parent=35 // pred_check_branch
          %220 = sbr.rel (%p218) target = $region48
        $region47: #{tpu_custom_call.1} parent=35 // pred_region
          %221 = dma.done [#allocation6], 256
        $region48: #{tpu_custom_call.1} parent=35 // pred_fallthru
          _
        %s222 = sand.u32 %s30, 1
        %s223 = scalar_lea.sflag [#allocation3], %s222
        %s224 = sand.u32 %s30, 1
        %s225 = smul.addr %s224, 4
        %s226 = scalar_lea.vmem [#allocation2], %s225
        %p227 = pneg %p43
        %p228 = pneg %p40
        %p229 = pneg %p64
        %p230 = pneg %p61
        %p231 = pneg %p85
        %p232 = pneg %p82
        %p233 = pneg %p106
        %p234 = pneg %p103
        %p235 = pneg %p132
        %p236 = pneg %p129
        %s237 = sand.u32 %s119, 1
        %s238 = scalar_lea.sflag [#allocation4], %s237
        %s239 = sand.u32 %s119, 1
        %s240 = smul.addr %s239, 8
        %s241 = scalar_lea.vmem [#allocation8], %s240
        %v243 = vld [vmem:[%s209] sm:$0xf]
        %v244 = vld [vmem:[#allocation5] sm:$0xf]
        %v245 = vld [vmem:[#allocation5 + $0x4] sm:$0xf]
        %v246 = vld [vmem:[#allocation5 + $0x8] sm:$0xf]
        %v247 = vld [vmem:[#allocation5 + $0xc] sm:$0xf]
        %v252 = vunpack.c.l.b16 %v244
        %v253 = vunpack.c.l.b16 %v245
        %v254 = vunpack.c.l.b16 %v246
        %v255 = vunpack.c.l.b16 %v247
        %v256 = vpack.c.b16 %v253, %v252
        %v257 = vpack.c.b16 %v255, %v254
        %vm260 = vcmask 261120
        %v262 = vsel %vm260, %v243, 0
        %264 = vmatprep.subr.bf16.mxu0 0
        %265 = vmatpush1.bf16.msra.mxu0 %v256
        %266 = vmatprep.subr.bf16.mxu0 0
        %267 = vmatpush1.bf16.msra.mxu0 %v257
        %268 = vmatprep.subr.bf16.mxu0 0
        %269 = vmatpush1.bf16.msra.mxu0 0
        %270 = vmatprep.subr.bf16.mxu0 0
        %271 = vmatpush1.bf16.msra.mxu0 0
        %272 = vmatprep.subr.bf16.mxu0 0
        %273 = vmatpush1.bf16.msra.mxu0 0
        %274 = vmatprep.subr.bf16.mxu0 0
        %275 = vmatpush1.bf16.msra.mxu0 0
        %276 = vmatprep.subr.bf16.mxu0 0
        %277 = vmatpush1.bf16.msra.mxu0 0
        %278 = vmatprep.subr.bf16.mxu0 0
        %279 = vmatpush1.bf16.msra.mxu0 0
        %280 = vmatprep.subr.bf16.mxu0 0
        %281 = vmatpush1.bf16.msra.mxu0 0
        %282 = vmatprep.subr.bf16.mxu0 0
        %283 = vmatpush1.bf16.msra.mxu0 0
        %284 = vmatprep.subr.bf16.mxu0 0
        %285 = vmatpush1.bf16.msra.mxu0 0
        %286 = vmatprep.subr.bf16.mxu0 0
        %287 = vmatpush1.bf16.msra.mxu0 0
        %288 = vmatprep.subr.bf16.mxu0 0
        %289 = vmatpush1.bf16.msra.mxu0 0
        %290 = vmatprep.subr.bf16.mxu0 0
        %291 = vmatpush1.bf16.msra.mxu0 0
        %292 = vmatprep.subr.bf16.mxu0 0
        %293 = vmatpush1.bf16.msra.mxu0 0
        %294 = vmatprep.subr.bf16.mxu0 0
        %295 = vmatpush1.bf16.msra.mxu0 0
        %296 = vmatprep.mubr.bf16.mxu0 0
        %297 = vmatmul.mubr.bf16.gmra.mrb[0].mxu0 %v262
        %v298 = vpop.f32.mrb[0].mxu0
        %v299 = vadd.f32 0.0, %v298
        %v300 = vpop.f32.mrb[0].mxu0
        %v301 = vpop.f32.mrb[0].mxu0
        %v302 = vpop.f32.mrb[0].mxu0
        %303 = vdwg.mxu0
        %305 = vrot.lane.b32.xlu0 %v299, 120
        %v306 = vpop.permute.xlu0 %305
        %308 = vrot.lane.b32.xlu0 %v299, 112
        %v309 = vpop.permute.xlu0 %308
        %311 = vrot.lane.b32.xlu0 %v299, 104
        %v312 = vpop.permute.xlu0 %311
        %v314 = vcombine.low %v299, %v309
        %v315 = vcombine.high %v299, %v309
        %v317 = vunpack.c.l.s4 1983009808
        %v318 = vunpack.c.0.s8 %v317
        %v319 = vlaneseq
        %v320 = vshrl.u32 %v319, 7
        %v321 = vsub.s32 %v318, %v320
        %v322 = vrot.slane %v314, %v321
        %v324 = vunpack.c.l.s4 1983009808
        %v325 = vunpack.c.0.s8 %v324
        %v326 = vlaneseq
        %v327 = vshrl.u32 %v326, 7
        %v328 = vsub.s32 %v325, %v327
        %v329 = vrot.slane %v315, %v328
        %v330 = vcombine.low %v306, %v312
        %v331 = vcombine.high %v306, %v312
        %v333 = vunpack.c.l.s4 1983009808
        %v334 = vunpack.c.0.s8 %v333
        %v335 = vlaneseq
        %v336 = vshrl.u32 %v335, 7
        %v337 = vsub.s32 %v334, %v336
        %v338 = vrot.slane %v330, %v337
        %v340 = vunpack.c.l.s4 1983009808
        %v341 = vunpack.c.0.s8 %v340
        %v342 = vlaneseq
        %v343 = vshrl.u32 %v342, 7
        %v344 = vsub.s32 %v341, %v343
        %v345 = vrot.slane %v331, %v344
        %v346 = vcombine.low %v322, %v338
        %v347 = vcombine.high %v322, %v338
        %v349 = vunpack.c.l.s4 1934713408
        %v350 = vunpack.c.0.s8 %v349
        %v351 = vlaneseq
        %v352 = vshrl.u32 %v351, 7
        %v353 = vsub.s32 %v350, %v352
        %v354 = vrot.slane %v346, %v353
        %v356 = vunpack.c.l.s4 1934713408
        %v357 = vunpack.c.0.s8 %v356
        %v358 = vlaneseq
        %v359 = vshrl.u32 %v358, 7
        %v360 = vsub.s32 %v357, %v359
        %v361 = vrot.slane %v347, %v360
        %v362 = vcombine.low %v329, %v345
        %v363 = vcombine.high %v329, %v345
        %v365 = vunpack.c.l.s4 1934713408
        %v366 = vunpack.c.0.s8 %v365
        %v367 = vlaneseq
        %v368 = vshrl.u32 %v367, 7
        %v369 = vsub.s32 %v366, %v368
        %v370 = vrot.slane %v362, %v369
        %v372 = vunpack.c.l.s4 1934713408
        %v373 = vunpack.c.0.s8 %v372
        %v374 = vlaneseq
        %v375 = vshrl.u32 %v374, 7
        %v376 = vsub.s32 %v373, %v375
        %v377 = vrot.slane %v363, %v376
        %v378 = vcombine.high %v354, 0.0
        %v379 = vcombine.high %v361, 0.0
        %v380 = vcombine.high %v370, 0.0
        %v381 = vcombine.high %v377, 0.0
        %v382 = vcombine.low %v354, %v361
        %v384 = vunpack.c.l.s4 1983009808
        %v385 = vunpack.c.0.s8 %v384
        %v386 = vlaneseq
        %v387 = vshrl.u32 %v386, 7
        %v388 = vsub.s32 %v385, %v387
        %v389 = vrot.slane %v382, %v388
        %v390 = vcombine.low %v378, %v379
        %v392 = vunpack.c.l.s4 1983009808
        %v393 = vunpack.c.0.s8 %v392
        %v394 = vlaneseq
        %v395 = vshrl.u32 %v394, 7
        %v396 = vsub.s32 %v393, %v395
        %v397 = vrot.slane %v390, %v396
        %v398 = vcombine.low %v370, %v377
        %v400 = vunpack.c.l.s4 1983009808
        %v401 = vunpack.c.0.s8 %v400
        %v402 = vlaneseq
        %v403 = vshrl.u32 %v402, 7
        %v404 = vsub.s32 %v401, %v403
        %v405 = vrot.slane %v398, %v404
        %v406 = vcombine.low %v380, %v381
        %v408 = vunpack.c.l.s4 1983009808
        %v409 = vunpack.c.0.s8 %v408
        %v410 = vlaneseq
        %v411 = vshrl.u32 %v410, 7
        %v412 = vsub.s32 %v409, %v411
        %v413 = vrot.slane %v406, %v412
        %v414 = vcombine.low %v389, %v397
        %v415 = vcombine.high %v389, %v397
        %v417 = vunpack.c.l.s4 1934713408
        %v418 = vunpack.c.0.s8 %v417
        %v419 = vlaneseq
        %v420 = vshrl.u32 %v419, 7
        %v421 = vsub.s32 %v418, %v420
        %v422 = vrot.slane %v414, %v421
        %v424 = vunpack.c.l.s4 1934713408
        %v425 = vunpack.c.0.s8 %v424
        %v426 = vlaneseq
        %v427 = vshrl.u32 %v426, 7
        %v428 = vsub.s32 %v425, %v427
        %v429 = vrot.slane %v415, %v428
        %v430 = vcombine.low %v405, %v413
        %v431 = vcombine.high %v405, %v413
        %v433 = vunpack.c.l.s4 1934713408
        %v434 = vunpack.c.0.s8 %v433
        %v435 = vlaneseq
        %v436 = vshrl.u32 %v435, 7
        %v437 = vsub.s32 %v434, %v436
        %v438 = vrot.slane %v430, %v437
        %v440 = vunpack.c.l.s4 1934713408
        %v441 = vunpack.c.0.s8 %v440
        %v442 = vlaneseq
        %v443 = vshrl.u32 %v442, 7
        %v444 = vsub.s32 %v441, %v443
        %v445 = vrot.slane %v431, %v444
        %v446 = vcombine.low %v422, %v438
        %v447 = vcombine.high %v422, %v438
        %v448 = vcombine.low %v429, %v445
        %v449 = vcombine.high %v429, %v445
        %v450 = vpack.c.bf16 %v446, %v446
        %v451 = vpack.c.bf16 %v447, %v447
        %v452 = vpack.c.bf16 %v448, %v448
        %v453 = vpack.c.bf16 %v449, %v449
        %454 = vrot.lane.b32.xlu0 %v299, 96
        %v455 = vpop.permute.xlu0 %454
        %456 = vrot.lane.b32.xlu0 %v306, 96
        %v457 = vpop.permute.xlu0 %456
        %458 = vrot.lane.b32.xlu0 %v309, 96
        %v459 = vpop.permute.xlu0 %458
        %460 = vrot.lane.b32.xlu0 %v312, 96
        %v461 = vpop.permute.xlu0 %460
        %v466 = vcombine.low %v455, %v459
        %v467 = vcombine.high %v455, %v459
        %v469 = vunpack.c.l.s4 1983009808
        %v470 = vunpack.c.0.s8 %v469
        %v471 = vlaneseq
        %v472 = vshrl.u32 %v471, 7
        %v473 = vsub.s32 %v470, %v472
        %v474 = vrot.slane %v466, %v473
        %v476 = vunpack.c.l.s4 1983009808
        %v477 = vunpack.c.0.s8 %v476
        %v478 = vlaneseq
        %v479 = vshrl.u32 %v478, 7
        %v480 = vsub.s32 %v477, %v479
        %v481 = vrot.slane %v467, %v480
        %v482 = vcombine.low %v457, %v461
        %v483 = vcombine.high %v457, %v461
        %v485 = vunpack.c.l.s4 1983009808
        %v486 = vunpack.c.0.s8 %v485
        %v487 = vlaneseq
        %v488 = vshrl.u32 %v487, 7
        %v489 = vsub.s32 %v486, %v488
        %v490 = vrot.slane %v482, %v489
        %v492 = vunpack.c.l.s4 1983009808
        %v493 = vunpack.c.0.s8 %v492
        %v494 = vlaneseq
        %v495 = vshrl.u32 %v494, 7
        %v496 = vsub.s32 %v493, %v495
        %v497 = vrot.slane %v483, %v496
        %v498 = vcombine.low %v474, %v490
        %v499 = vcombine.high %v474, %v490
        %v501 = vunpack.c.l.s4 1934713408
        %v502 = vunpack.c.0.s8 %v501
        %v503 = vlaneseq
        %v504 = vshrl.u32 %v503, 7
        %v505 = vsub.s32 %v502, %v504
        %v506 = vrot.slane %v498, %v505
        %v508 = vunpack.c.l.s4 1934713408
        %v509 = vunpack.c.0.s8 %v508
        %v510 = vlaneseq
        %v511 = vshrl.u32 %v510, 7
        %v512 = vsub.s32 %v509, %v511
        %v513 = vrot.slane %v499, %v512
        %v514 = vcombine.low %v481, %v497
        %v515 = vcombine.high %v481, %v497
        %v517 = vunpack.c.l.s4 1934713408
        %v518 = vunpack.c.0.s8 %v517
        %v519 = vlaneseq
        %v520 = vshrl.u32 %v519, 7
        %v521 = vsub.s32 %v518, %v520
        %v522 = vrot.slane %v514, %v521
        %v524 = vunpack.c.l.s4 1934713408
        %v525 = vunpack.c.0.s8 %v524
        %v526 = vlaneseq
        %v527 = vshrl.u32 %v526, 7
        %v528 = vsub.s32 %v525, %v527
        %v529 = vrot.slane %v515, %v528
        %v530 = vcombine.high %v506, 0.0
        %v531 = vcombine.high %v513, 0.0
        %v532 = vcombine.high %v522, 0.0
        %v533 = vcombine.high %v529, 0.0
        %v534 = vcombine.low %v506, %v513
        %v536 = vunpack.c.l.s4 1983009808
        %v537 = vunpack.c.0.s8 %v536
        %v538 = vlaneseq
        %v539 = vshrl.u32 %v538, 7
        %v540 = vsub.s32 %v537, %v539
        %v541 = vrot.slane %v534, %v540
        %v542 = vcombine.low %v530, %v531
        %v544 = vunpack.c.l.s4 1983009808
        %v545 = vunpack.c.0.s8 %v544
        %v546 = vlaneseq
        %v547 = vshrl.u32 %v546, 7
        %v548 = vsub.s32 %v545, %v547
        %v549 = vrot.slane %v542, %v548
        %v550 = vcombine.low %v522, %v529
        %v552 = vunpack.c.l.s4 1983009808
        %v553 = vunpack.c.0.s8 %v552
        %v554 = vlaneseq
        %v555 = vshrl.u32 %v554, 7
        %v556 = vsub.s32 %v553, %v555
        %v557 = vrot.slane %v550, %v556
        %v558 = vcombine.low %v532, %v533
        %v560 = vunpack.c.l.s4 1983009808
        %v561 = vunpack.c.0.s8 %v560
        %v562 = vlaneseq
        %v563 = vshrl.u32 %v562, 7
        %v564 = vsub.s32 %v561, %v563
        %v565 = vrot.slane %v558, %v564
        %v566 = vcombine.low %v541, %v549
        %v567 = vcombine.high %v541, %v549
        %v569 = vunpack.c.l.s4 1934713408
        %v570 = vunpack.c.0.s8 %v569
        %v571 = vlaneseq
        %v572 = vshrl.u32 %v571, 7
        %v573 = vsub.s32 %v570, %v572
        %v574 = vrot.slane %v566, %v573
        %v576 = vunpack.c.l.s4 1934713408
        %v577 = vunpack.c.0.s8 %v576
        %v578 = vlaneseq
        %v579 = vshrl.u32 %v578, 7
        %v580 = vsub.s32 %v577, %v579
        %v581 = vrot.slane %v567, %v580
        %v582 = vcombine.low %v557, %v565
        %v583 = vcombine.high %v557, %v565
        %v585 = vunpack.c.l.s4 1934713408
        %v586 = vunpack.c.0.s8 %v585
        %v587 = vlaneseq
        %v588 = vshrl.u32 %v587, 7
        %v589 = vsub.s32 %v586, %v588
        %v590 = vrot.slane %v582, %v589
        %v592 = vunpack.c.l.s4 1934713408
        %v593 = vunpack.c.0.s8 %v592
        %v594 = vlaneseq
        %v595 = vshrl.u32 %v594, 7
        %v596 = vsub.s32 %v593, %v595
        %v597 = vrot.slane %v583, %v596
        %v598 = vcombine.low %v574, %v590
        %v599 = vcombine.high %v574, %v590
        %v600 = vcombine.low %v581, %v597
        %v601 = vcombine.high %v581, %v597
        %v602 = vpack.c.bf16 %v598, %v598
        %v603 = vpack.c.bf16 %v599, %v599
        %v604 = vpack.c.bf16 %v600, %v600
        %v605 = vpack.c.bf16 %v601, %v601
        %606 = vrot.lane.b32.xlu0 %v299, 64
        %v607 = vpop.permute.xlu0 %606
        %608 = vrot.lane.b32.xlu0 %v306, 64
        %v609 = vpop.permute.xlu0 %608
        %610 = vrot.lane.b32.xlu0 %v309, 64
        %v611 = vpop.permute.xlu0 %610
        %612 = vrot.lane.b32.xlu0 %v312, 64
        %v613 = vpop.permute.xlu0 %612
        %v618 = vcombine.low %v607, %v611
        %v619 = vcombine.high %v607, %v611
        %v621 = vunpack.c.l.s4 1983009808
        %v622 = vunpack.c.0.s8 %v621
        %v623 = vlaneseq
        %v624 = vshrl.u32 %v623, 7
        %v625 = vsub.s32 %v622, %v624
        %v626 = vrot.slane %v618, %v625
        %v628 = vunpack.c.l.s4 1983009808
        %v629 = vunpack.c.0.s8 %v628
        %v630 = vlaneseq
        %v631 = vshrl.u32 %v630, 7
        %v632 = vsub.s32 %v629, %v631
        %v633 = vrot.slane %v619, %v632
        %v634 = vcombine.low %v609, %v613
        %v635 = vcombine.high %v609, %v613
        %v637 = vunpack.c.l.s4 1983009808
        %v638 = vunpack.c.0.s8 %v637
        %v639 = vlaneseq
        %v640 = vshrl.u32 %v639, 7
        %v641 = vsub.s32 %v638, %v640
        %v642 = vrot.slane %v634, %v641
        %v644 = vunpack.c.l.s4 1983009808
        %v645 = vunpack.c.0.s8 %v644
        %v646 = vlaneseq
        %v647 = vshrl.u32 %v646, 7
        %v648 = vsub.s32 %v645, %v647
        %v649 = vrot.slane %v635, %v648
        %v650 = vcombine.low %v626, %v642
        %v651 = vcombine.high %v626, %v642
        %v653 = vunpack.c.l.s4 1934713408
        %v654 = vunpack.c.0.s8 %v653
        %v655 = vlaneseq
        %v656 = vshrl.u32 %v655, 7
        %v657 = vsub.s32 %v654, %v656
        %v658 = vrot.slane %v650, %v657
        %v660 = vunpack.c.l.s4 1934713408
        %v661 = vunpack.c.0.s8 %v660
        %v662 = vlaneseq
        %v663 = vshrl.u32 %v662, 7
        %v664 = vsub.s32 %v661, %v663
        %v665 = vrot.slane %v651, %v664
        %v666 = vcombine.low %v633, %v649
        %v667 = vcombine.high %v633, %v649
        %v669 = vunpack.c.l.s4 1934713408
        %v670 = vunpack.c.0.s8 %v669
        %v671 = vlaneseq
        %v672 = vshrl.u32 %v671, 7
        %v673 = vsub.s32 %v670, %v672
        %v674 = vrot.slane %v666, %v673
        %v676 = vunpack.c.l.s4 1934713408
        %v677 = vunpack.c.0.s8 %v676
        %v678 = vlaneseq
        %v679 = vshrl.u32 %v678, 7
        %v680 = vsub.s32 %v677, %v679
        %v681 = vrot.slane %v667, %v680
        %v682 = vcombine.high %v658, 0.0
        %v683 = vcombine.high %v665, 0.0
        %v684 = vcombine.high %v674, 0.0
        %v685 = vcombine.high %v681, 0.0
        %v686 = vcombine.low %v658, %v665
        %v688 = vunpack.c.l.s4 1983009808
        %v689 = vunpack.c.0.s8 %v688
        %v690 = vlaneseq
        %v691 = vshrl.u32 %v690, 7
        %v692 = vsub.s32 %v689, %v691
        %v693 = vrot.slane %v686, %v692
        %v694 = vcombine.low %v682, %v683
        %v696 = vunpack.c.l.s4 1983009808
        %v697 = vunpack.c.0.s8 %v696
        %v698 = vlaneseq
        %v699 = vshrl.u32 %v698, 7
        %v700 = vsub.s32 %v697, %v699
        %v701 = vrot.slane %v694, %v700
        %v702 = vcombine.low %v674, %v681
        %v704 = vunpack.c.l.s4 1983009808
        %v705 = vunpack.c.0.s8 %v704
        %v706 = vlaneseq
        %v707 = vshrl.u32 %v706, 7
        %v708 = vsub.s32 %v705, %v707
        %v709 = vrot.slane %v702, %v708
        %v710 = vcombine.low %v684, %v685
        %v712 = vunpack.c.l.s4 1983009808
        %v713 = vunpack.c.0.s8 %v712
        %v714 = vlaneseq
        %v715 = vshrl.u32 %v714, 7
        %v716 = vsub.s32 %v713, %v715
        %v717 = vrot.slane %v710, %v716
        %v718 = vcombine.low %v693, %v701
        %v719 = vcombine.high %v693, %v701
        %v721 = vunpack.c.l.s4 1934713408
        %v722 = vunpack.c.0.s8 %v721
        %v723 = vlaneseq
        %v724 = vshrl.u32 %v723, 7
        %v725 = vsub.s32 %v722, %v724
        %v726 = vrot.slane %v718, %v725
        %v728 = vunpack.c.l.s4 1934713408
        %v729 = vunpack.c.0.s8 %v728
        %v730 = vlaneseq
        %v731 = vshrl.u32 %v730, 7
        %v732 = vsub.s32 %v729, %v731
        %v733 = vrot.slane %v719, %v732
        %v734 = vcombine.low %v709, %v717
        %v735 = vcombine.high %v709, %v717
        %v737 = vunpack.c.l.s4 1934713408
        %v738 = vunpack.c.0.s8 %v737
        %v739 = vlaneseq
        %v740 = vshrl.u32 %v739, 7
        %v741 = vsub.s32 %v738, %v740
        %v742 = vrot.slane %v734, %v741
        %v744 = vunpack.c.l.s4 1934713408
        %v745 = vunpack.c.0.s8 %v744
        %v746 = vlaneseq
        %v747 = vshrl.u32 %v746, 7
        %v748 = vsub.s32 %v745, %v747
        %v749 = vrot.slane %v735, %v748
        %v750 = vcombine.low %v726, %v742
        %v751 = vcombine.high %v726, %v742
        %v752 = vcombine.low %v733, %v749
        %v753 = vcombine.high %v733, %v749
        %v754 = vpack.c.bf16 %v750, %v750
        %v755 = vpack.c.bf16 %v751, %v751
        %v756 = vpack.c.bf16 %v752, %v752
        %v757 = vpack.c.bf16 %v753, %v753
        %vm758 = vcmask 64512
        %v760 = vsel %vm758, %v450, 0
        %v763 = vsel %vm758, %v602, 0
        %765 = vmatprep.subr.bf16.mxu0 0
        %766 = vmatpush1.bf16.xpose.msra.mxu0 %v763
        %767 = vmatprep.subr.bf16.mxu0 0
        %768 = vmatpush1.bf16.xpose.msra.mxu0 0
        %769 = vmatprep.subr.bf16.mxu0 0
        %770 = vmatpush1.bf16.xpose.msra.mxu0 0
        %771 = vmatprep.subr.bf16.mxu0 0
        %772 = vmatpush1.bf16.xpose.msra.mxu0 0
        %773 = vmatprep.subr.bf16.mxu0 0
        %774 = vmatpush1.bf16.xpose.msra.mxu0 0
        %775 = vmatprep.subr.bf16.mxu0 0
        %776 = vmatpush1.bf16.xpose.msra.mxu0 0
        %777 = vmatprep.subr.bf16.mxu0 0
        %778 = vmatpush1.bf16.xpose.msra.mxu0 0
        %779 = vmatprep.subr.bf16.mxu0 0
        %780 = vmatpush1.bf16.xpose.msra.mxu0 0
        %781 = vmatprep.subr.bf16.mxu0 0
        %782 = vmatpush1.bf16.xpose.msra.mxu0 0
        %783 = vmatprep.subr.bf16.mxu0 0
        %784 = vmatpush1.bf16.xpose.msra.mxu0 0
        %785 = vmatprep.subr.bf16.mxu0 0
        %786 = vmatpush1.bf16.xpose.msra.mxu0 0
        %787 = vmatprep.subr.bf16.mxu0 0
        %788 = vmatpush1.bf16.xpose.msra.mxu0 0
        %789 = vmatprep.subr.bf16.mxu0 0
        %790 = vmatpush1.bf16.xpose.msra.mxu0 0
        %791 = vmatprep.subr.bf16.mxu0 0
        %792 = vmatpush1.bf16.xpose.msra.mxu0 0
        %793 = vmatprep.subr.bf16.mxu0 0
        %794 = vmatpush1.bf16.xpose.msra.mxu0 0
        %795 = vmatprep.subr.bf16.mxu0 0
        %796 = vmatpush1.bf16.xpose.msra.mxu0 0
        %797 = vmatprep.mubr.bf16.mxu0 0
        %798 = vmatmul.mubr.bf16.gmra.mrb[0].mxu0 %v760
        %v799 = vpop.f32.mrb[0].mxu0
        %v800 = vadd.f32 0.0, %v799
        %v801 = vpop.f32.mrb[0].mxu0
        %v802 = vpop.f32.mrb[0].mxu0
        %v803 = vpop.f32.mrb[0].mxu0
        %804 = vdwg.mxu0
        %v806 = vsel %vm758, %v451, 0
        %v809 = vsel %vm758, %v603, 0
        %811 = vmatprep.subr.bf16.mxu0 0
        %812 = vmatpush1.bf16.xpose.msra.mxu0 %v809
        %813 = vmatprep.subr.bf16.mxu0 0
        %814 = vmatpush1.bf16.xpose.msra.mxu0 0
        %815 = vmatprep.subr.bf16.mxu0 0
        %816 = vmatpush1.bf16.xpose.msra.mxu0 0
        %817 = vmatprep.subr.bf16.mxu0 0
        %818 = vmatpush1.bf16.xpose.msra.mxu0 0
        %819 = vmatprep.subr.bf16.mxu0 0
        %820 = vmatpush1.bf16.xpose.msra.mxu0 0
        %821 = vmatprep.subr.bf16.mxu0 0
        %822 = vmatpush1.bf16.xpose.msra.mxu0 0
        %823 = vmatprep.subr.bf16.mxu0 0
        %824 = vmatpush1.bf16.xpose.msra.mxu0 0
        %825 = vmatprep.subr.bf16.mxu0 0
        %826 = vmatpush1.bf16.xpose.msra.mxu0 0
        %827 = vmatprep.subr.bf16.mxu0 0
        %828 = vmatpush1.bf16.xpose.msra.mxu0 0
        %829 = vmatprep.subr.bf16.mxu0 0
        %830 = vmatpush1.bf16.xpose.msra.mxu0 0
        %831 = vmatprep.subr.bf16.mxu0 0
        %832 = vmatpush1.bf16.xpose.msra.mxu0 0
        %833 = vmatprep.subr.bf16.mxu0 0
        %834 = vmatpush1.bf16.xpose.msra.mxu0 0
        %835 = vmatprep.subr.bf16.mxu0 0
        %836 = vmatpush1.bf16.xpose.msra.mxu0 0
        %837 = vmatprep.subr.bf16.mxu0 0
        %838 = vmatpush1.bf16.xpose.msra.mxu0 0
        %839 = vmatprep.subr.bf16.mxu0 0
        %840 = vmatpush1.bf16.xpose.msra.mxu0 0
        %841 = vmatprep.subr.bf16.mxu0 0
        %842 = vmatpush1.bf16.xpose.msra.mxu0 0
        %843 = vmatprep.mubr.bf16.mxu0 0
        %844 = vmatmul.mubr.bf16.gmra.mrb[0].mxu0 %v806
        %v845 = vpop.f32.mrb[0].mxu0
        %v846 = vadd.f32 0.0, %v845
        %v847 = vpop.f32.mrb[0].mxu0
        %v848 = vpop.f32.mrb[0].mxu0
        %v849 = vpop.f32.mrb[0].mxu0
        %850 = vdwg.mxu0
        %v852 = vsel %vm758, %v452, 0
        %v855 = vsel %vm758, %v604, 0
        %857 = vmatprep.subr.bf16.mxu0 0
        %858 = vmatpush1.bf16.xpose.msra.mxu0 %v855
        %859 = vmatprep.subr.bf16.mxu0 0
        %860 = vmatpush1.bf16.xpose.msra.mxu0 0
        %861 = vmatprep.subr.bf16.mxu0 0
        %862 = vmatpush1.bf16.xpose.msra.mxu0 0
        %863 = vmatprep.subr.bf16.mxu0 0
        %864 = vmatpush1.bf16.xpose.msra.mxu0 0
        %865 = vmatprep.subr.bf16.mxu0 0
        %866 = vmatpush1.bf16.xpose.msra.mxu0 0
        %867 = vmatprep.subr.bf16.mxu0 0
        %868 = vmatpush1.bf16.xpose.msra.mxu0 0
        %869 = vmatprep.subr.bf16.mxu0 0
        %870 = vmatpush1.bf16.xpose.msra.mxu0 0
        %871 = vmatprep.subr.bf16.mxu0 0
        %872 = vmatpush1.bf16.xpose.msra.mxu0 0
        %873 = vmatprep.subr.bf16.mxu0 0
        %874 = vmatpush1.bf16.xpose.msra.mxu0 0
        %875 = vmatprep.subr.bf16.mxu0 0
        %876 = vmatpush1.bf16.xpose.msra.mxu0 0
        %877 = vmatprep.subr.bf16.mxu0 0
        %878 = vmatpush1.bf16.xpose.msra.mxu0 0
        %879 = vmatprep.subr.bf16.mxu0 0
        %880 = vmatpush1.bf16.xpose.msra.mxu0 0
        %881 = vmatprep.subr.bf16.mxu0 0
        %882 = vmatpush1.bf16.xpose.msra.mxu0 0
        %883 = vmatprep.subr.bf16.mxu0 0
        %884 = vmatpush1.bf16.xpose.msra.mxu0 0
        %885 = vmatprep.subr.bf16.mxu0 0
        %886 = vmatpush1.bf16.xpose.msra.mxu0 0
        %887 = vmatprep.subr.bf16.mxu0 0
        %888 = vmatpush1.bf16.xpose.msra.mxu0 0
        %889 = vmatprep.mubr.bf16.mxu0 0
        %890 = vmatmul.mubr.bf16.gmra.mrb[0].mxu0 %v852
        %v891 = vpop.f32.mrb[0].mxu0
        %v892 = vadd.f32 0.0, %v891
        %v893 = vpop.f32.mrb[0].mxu0
        %v894 = vpop.f32.mrb[0].mxu0
        %v895 = vpop.f32.mrb[0].mxu0
        %896 = vdwg.mxu0
        %v898 = vsel %vm758, %v453, 0
        %v901 = vsel %vm758, %v605, 0
        %903 = vmatprep.subr.bf16.mxu0 0
        %904 = vmatpush1.bf16.xpose.msra.mxu0 %v901
        %905 = vmatprep.subr.bf16.mxu0 0
        %906 = vmatpush1.bf16.xpose.msra.mxu0 0
        %907 = vmatprep.subr.bf16.mxu0 0
        %908 = vmatpush1.bf16.xpose.msra.mxu0 0
        %909 = vmatprep.subr.bf16.mxu0 0
        %910 = vmatpush1.bf16.xpose.msra.mxu0 0
        %911 = vmatprep.subr.bf16.mxu0 0
        %912 = vmatpush1.bf16.xpose.msra.mxu0 0
        %913 = vmatprep.subr.bf16.mxu0 0
        %914 = vmatpush1.bf16.xpose.msra.mxu0 0
        %915 = vmatprep.subr.bf16.mxu0 0
        %916 = vmatpush1.bf16.xpose.msra.mxu0 0
        %917 = vmatprep.subr.bf16.mxu0 0
        %918 = vmatpush1.bf16.xpose.msra.mxu0 0
        %919 = vmatprep.subr.bf16.mxu0 0
        %920 = vmatpush1.bf16.xpose.msra.mxu0 0
        %921 = vmatprep.subr.bf16.mxu0 0
        %922 = vmatpush1.bf16.xpose.msra.mxu0 0
        %923 = vmatprep.subr.bf16.mxu0 0
        %924 = vmatpush1.bf16.xpose.msra.mxu0 0
        %925 = vmatprep.subr.bf16.mxu0 0
        %926 = vmatpush1.bf16.xpose.msra.mxu0 0
        %927 = vmatprep.subr.bf16.mxu0 0
        %928 = vmatpush1.bf16.xpose.msra.mxu0 0
        %929 = vmatprep.subr.bf16.mxu0 0
        %930 = vmatpush1.bf16.xpose.msra.mxu0 0
        %931 = vmatprep.subr.bf16.mxu0 0
        %932 = vmatpush1.bf16.xpose.msra.mxu0 0
        %933 = vmatprep.subr.bf16.mxu0 0
        %934 = vmatpush1.bf16.xpose.msra.mxu0 0
        %935 = vmatprep.mubr.bf16.mxu0 0
        %936 = vmatmul.mubr.bf16.gmra.mrb[0].mxu0 %v898
        %v937 = vpop.f32.mrb[0].mxu0
        %v938 = vadd.f32 0.0, %v937
        %v939 = vpop.f32.mrb[0].mxu0
        %v940 = vpop.f32.mrb[0].mxu0
        %v941 = vpop.f32.mrb[0].mxu0
        %942 = vdwg.mxu0
        %v943 = vsel %vm758, %v800, -inf
        %944 = vmax.xlane.f32.xlu0 %v943
        %v945 = vpop.xlane.xlu0 %944
        %v946 = vsel %vm758, %v846, -inf
        %947 = vmax.xlane.f32.xlu0 %v946
        %v948 = vpop.xlane.xlu0 %947
        %v949 = vsel %vm758, %v892, -inf
        %950 = vmax.xlane.f32.xlu0 %v949
        %v951 = vpop.xlane.xlu0 %950
        %v952 = vsel %vm758, %v938, -inf
        %953 = vmax.xlane.f32.xlu0 %v952
        %v954 = vpop.xlane.xlu0 %953
        %v955 = vsub.f32 %v800, %v945
        %v956 = vsub.f32 %v846, %v948
        %v957 = vsub.f32 %v892, %v951
        %v958 = vsub.f32 %v938, %v954
        %v959 = vmul.f32 %v955, 1.442695
        %v960 = vpow.pop %v959
        %v961 = vmul.f32 %v956, 1.442695
        %v962 = vpow.pop %v961
        %v963 = vmul.f32 %v957, 1.442695
        %v964 = vpow.pop %v963
        %v965 = vmul.f32 %v958, 1.442695
        %v966 = vpow.pop %v965
        %v967 = vsel %vm758, %v960, 0.0
        %968 = vadd.xlane.f32.xlu0 %v967
        %v969 = vpop.xlane.xlu0 %968
        %v970 = vsel %vm758, %v962, 0.0
        %971 = vadd.xlane.f32.xlu0 %v970
        %v972 = vpop.xlane.xlu0 %971
        %v973 = vsel %vm758, %v964, 0.0
        %974 = vadd.xlane.f32.xlu0 %v973
        %v975 = vpop.xlane.xlu0 %974
        %v976 = vsel %vm758, %v966, 0.0
        %977 = vadd.xlane.f32.xlu0 %v976
        %v978 = vpop.xlane.xlu0 %977
        %v979 = vrcp.pop %v969
        %v980 = vmul.f32 %v960, %v979
        %v981 = vrcp.pop %v972
        %v982 = vmul.f32 %v962, %v981
        %v983 = vrcp.pop %v975
        %v984 = vmul.f32 %v964, %v983
        %v985 = vrcp.pop %v978
        %v986 = vmul.f32 %v966, %v985
        %v987 = vpack.c.bf16 %v980, %v980
        %v988 = vpack.c.bf16 %v982, %v982
        %v989 = vpack.c.bf16 %v984, %v984
        %v990 = vpack.c.bf16 %v986, %v986
        %v992 = vsel %vm758, %v987, 0
        %vm994 = vcmask 1043456
        %v996 = vsel %vm994, %v754, 0
        %998 = vmatprep.subr.bf16.mxu0 0
        %999 = vmatpush1.bf16.msra.mxu0 %v996
        %1000 = vmatprep.subr.bf16.mxu0 0
        %1001 = vmatpush1.bf16.msra.mxu0 0
        %1002 = vmatprep.subr.bf16.mxu0 0
        %1003 = vmatpush1.bf16.msra.mxu0 0
        %1004 = vmatprep.subr.bf16.mxu0 0
        %1005 = vmatpush1.bf16.msra.mxu0 0
        %1006 = vmatprep.subr.bf16.mxu0 0
        %1007 = vmatpush1.bf16.msra.mxu0 0
        %1008 = vmatprep.subr.bf16.mxu0 0
        %1009 = vmatpush1.bf16.msra.mxu0 0
        %1010 = vmatprep.subr.bf16.mxu0 0
        %1011 = vmatpush1.bf16.msra.mxu0 0
        %1012 = vmatprep.subr.bf16.mxu0 0
        %1013 = vmatpush1.bf16.msra.mxu0 0
        %1014 = vmatprep.subr.bf16.mxu0 0
        %1015 = vmatpush1.bf16.msra.mxu0 0
        %1016 = vmatprep.subr.bf16.mxu0 0
        %1017 = vmatpush1.bf16.msra.mxu0 0
        %1018 = vmatprep.subr.bf16.mxu0 0
        %1019 = vmatpush1.bf16.msra.mxu0 0
        %1020 = vmatprep.subr.bf16.mxu0 0
        %1021 = vmatpush1.bf16.msra.mxu0 0
        %1022 = vmatprep.subr.bf16.mxu0 0
        %1023 = vmatpush1.bf16.msra.mxu0 0
        %1024 = vmatprep.subr.bf16.mxu0 0
        %1025 = vmatpush1.bf16.msra.mxu0 0
        %1026 = vmatprep.subr.bf16.mxu0 0
        %1027 = vmatpush1.bf16.msra.mxu0 0
        %1028 = vmatprep.subr.bf16.mxu0 0
        %1029 = vmatpush1.bf16.msra.mxu0 0
        %1030 = vmatprep.mubr.bf16.mxu0 0
        %1031 = vmatmul.mubr.bf16.gmra.mrb[0].mxu0 %v992
        %v1032 = vpop.f32.mrb[0].mxu0
        %v1033 = vadd.f32 0.0, %v1032
        %v1034 = vpop.f32.mrb[0].mxu0
        %v1035 = vpop.f32.mrb[0].mxu0
        %v1036 = vpop.f32.mrb[0].mxu0
        %1037 = vdwg.mxu0
        %v1039 = vsel %vm758, %v988, 0
        %v1042 = vsel %vm994, %v755, 0
        %1044 = vmatprep.subr.bf16.mxu0 0
        %1045 = vmatpush1.bf16.msra.mxu0 %v1042
        %1046 = vmatprep.subr.bf16.mxu0 0
        %1047 = vmatpush1.bf16.msra.mxu0 0
        %1048 = vmatprep.subr.bf16.mxu0 0
        %1049 = vmatpush1.bf16.msra.mxu0 0
        %1050 = vmatprep.subr.bf16.mxu0 0
        %1051 = vmatpush1.bf16.msra.mxu0 0
        %1052 = vmatprep.subr.bf16.mxu0 0
        %1053 = vmatpush1.bf16.msra.mxu0 0
        %1054 = vmatprep.subr.bf16.mxu0 0
        %1055 = vmatpush1.bf16.msra.mxu0 0
        %1056 = vmatprep.subr.bf16.mxu0 0
        %1057 = vmatpush1.bf16.msra.mxu0 0
        %1058 = vmatprep.subr.bf16.mxu0 0
        %1059 = vmatpush1.bf16.msra.mxu0 0
        %1060 = vmatprep.subr.bf16.mxu0 0
        %1061 = vmatpush1.bf16.msra.mxu0 0
        %1062 = vmatprep.subr.bf16.mxu0 0
        %1063 = vmatpush1.bf16.msra.mxu0 0
        %1064 = vmatprep.subr.bf16.mxu0 0
        %1065 = vmatpush1.bf16.msra.mxu0 0
        %1066 = vmatprep.subr.bf16.mxu0 0
        %1067 = vmatpush1.bf16.msra.mxu0 0
        %1068 = vmatprep.subr.bf16.mxu0 0
        %1069 = vmatpush1.bf16.msra.mxu0 0
        %1070 = vmatprep.subr.bf16.mxu0 0
        %1071 = vmatpush1.bf16.msra.mxu0 0
        %1072 = vmatprep.subr.bf16.mxu0 0
        %1073 = vmatpush1.bf16.msra.mxu0 0
        %1074 = vmatprep.subr.bf16.mxu0 0
        %1075 = vmatpush1.bf16.msra.mxu0 0
        %1076 = vmatprep.mubr.bf16.mxu0 0
        %1077 = vmatmul.mubr.bf16.gmra.mrb[0].mxu0 %v1039
        %v1078 = vpop.f32.mrb[0].mxu0
        %v1079 = vadd.f32 0.0, %v1078
        %v1080 = vpop.f32.mrb[0].mxu0
        %v1081 = vpop.f32.mrb[0].mxu0
        %v1082 = vpop.f32.mrb[0].mxu0
        %1083 = vdwg.mxu0
        %v1085 = vsel %vm758, %v989, 0
        %v1088 = vsel %vm994, %v756, 0
        %1090 = vmatprep.subr.bf16.mxu0 0
        %1091 = vmatpush1.bf16.msra.mxu0 %v1088
        %1092 = vmatprep.subr.bf16.mxu0 0
        %1093 = vmatpush1.bf16.msra.mxu0 0
        %1094 = vmatprep.subr.bf16.mxu0 0
        %1095 = vmatpush1.bf16.msra.mxu0 0
        %1096 = vmatprep.subr.bf16.mxu0 0
        %1097 = vmatpush1.bf16.msra.mxu0 0
        %1098 = vmatprep.subr.bf16.mxu0 0
        %1099 = vmatpush1.bf16.msra.mxu0 0
        %1100 = vmatprep.subr.bf16.mxu0 0
        %1101 = vmatpush1.bf16.msra.mxu0 0
        %1102 = vmatprep.subr.bf16.mxu0 0
        %1103 = vmatpush1.bf16.msra.mxu0 0
        %1104 = vmatprep.subr.bf16.mxu0 0
        %1105 = vmatpush1.bf16.msra.mxu0 0
        %1106 = vmatprep.subr.bf16.mxu0 0
        %1107 = vmatpush1.bf16.msra.mxu0 0
        %1108 = vmatprep.subr.bf16.mxu0 0
        %1109 = vmatpush1.bf16.msra.mxu0 0
        %1110 = vmatprep.subr.bf16.mxu0 0
        %1111 = vmatpush1.bf16.msra.mxu0 0
        %1112 = vmatprep.subr.bf16.mxu0 0
        %1113 = vmatpush1.bf16.msra.mxu0 0
        %1114 = vmatprep.subr.bf16.mxu0 0
        %1115 = vmatpush1.bf16.msra.mxu0 0
        %1116 = vmatprep.subr.bf16.mxu0 0
        %1117 = vmatpush1.bf16.msra.mxu0 0
        %1118 = vmatprep.subr.bf16.mxu0 0
        %1119 = vmatpush1.bf16.msra.mxu0 0
        %1120 = vmatprep.subr.bf16.mxu0 0
        %1121 = vmatpush1.bf16.msra.mxu0 0
        %1122 = vmatprep.mubr.bf16.mxu0 0
        %1123 = vmatmul.mubr.bf16.gmra.mrb[0].mxu0 %v1085
        %v1124 = vpop.f32.mrb[0].mxu0
        %v1125 = vadd.f32 0.0, %v1124
        %v1126 = vpop.f32.mrb[0].mxu0
        %v1127 = vpop.f32.mrb[0].mxu0
        %v1128 = vpop.f32.mrb[0].mxu0
        %1129 = vdwg.mxu0
        %v1131 = vsel %vm758, %v990, 0
        %v1134 = vsel %vm994, %v757, 0
        %1136 = vmatprep.subr.bf16.mxu0 0
        %1137 = vmatpush1.bf16.msra.mxu0 %v1134
        %1138 = vmatprep.subr.bf16.mxu0 0
        %1139 = vmatpush1.bf16.msra.mxu0 0
        %1140 = vmatprep.subr.bf16.mxu0 0
        %1141 = vmatpush1.bf16.msra.mxu0 0
        %1142 = vmatprep.subr.bf16.mxu0 0
        %1143 = vmatpush1.bf16.msra.mxu0 0
        %1144 = vmatprep.subr.bf16.mxu0 0
        %1145 = vmatpush1.bf16.msra.mxu0 0
        %1146 = vmatprep.subr.bf16.mxu0 0
        %1147 = vmatpush1.bf16.msra.mxu0 0
        %1148 = vmatprep.subr.bf16.mxu0 0
        %1149 = vmatpush1.bf16.msra.mxu0 0
        %1150 = vmatprep.subr.bf16.mxu0 0
        %1151 = vmatpush1.bf16.msra.mxu0 0
        %1152 = vmatprep.subr.bf16.mxu0 0
        %1153 = vmatpush1.bf16.msra.mxu0 0
        %1154 = vmatprep.subr.bf16.mxu0 0
        %1155 = vmatpush1.bf16.msra.mxu0 0
        %1156 = vmatprep.subr.bf16.mxu0 0
        %1157 = vmatpush1.bf16.msra.mxu0 0
        %1158 = vmatprep.subr.bf16.mxu0 0
        %1159 = vmatpush1.bf16.msra.mxu0 0
        %1160 = vmatprep.subr.bf16.mxu0 0
        %1161 = vmatpush1.bf16.msra.mxu0 0
        %1162 = vmatprep.subr.bf16.mxu0 0
        %1163 = vmatpush1.bf16.msra.mxu0 0
        %1164 = vmatprep.subr.bf16.mxu0 0
        %1165 = vmatpush1.bf16.msra.mxu0 0
        %1166 = vmatprep.subr.bf16.mxu0 0
        %1167 = vmatpush1.bf16.msra.mxu0 0
        %1168 = vmatprep.mubr.bf16.mxu0 0
        %1169 = vmatmul.mubr.bf16.gmra.mrb[0].mxu0 %v1131
        %v1170 = vpop.f32.mrb[0].mxu0
        %v1171 = vadd.f32 0.0, %v1170
        %v1172 = vpop.f32.mrb[0].mxu0
        %v1173 = vpop.f32.mrb[0].mxu0
        %v1174 = vpop.f32.mrb[0].mxu0
        %1175 = vdwg.mxu0
        %v1176 = vcombine.low %v1033, %v1125
        %v1177 = vcombine.high %v1033, %v1125
        %v1179 = vunpack.c.l.s4 1983009808
        %v1180 = vunpack.c.0.s8 %v1179
        %v1181 = vlaneseq
        %v1182 = vshrl.u32 %v1181, 7
        %v1183 = vsub.s32 %v1180, %v1182
        %v1184 = vrot.slane %v1176, %v1183
        %v1186 = vunpack.c.l.s4 1983009808
        %v1187 = vunpack.c.0.s8 %v1186
        %v1188 = vlaneseq
        %v1189 = vshrl.u32 %v1188, 7
        %v1190 = vsub.s32 %v1187, %v1189
        %v1191 = vrot.slane %v1177, %v1190
        %v1192 = vcombine.low %v1079, %v1171
        %v1193 = vcombine.high %v1079, %v1171
        %v1195 = vunpack.c.l.s4 1983009808
        %v1196 = vunpack.c.0.s8 %v1195
        %v1197 = vlaneseq
        %v1198 = vshrl.u32 %v1197, 7
        %v1199 = vsub.s32 %v1196, %v1198
        %v1200 = vrot.slane %v1192, %v1199
        %v1202 = vunpack.c.l.s4 1983009808
        %v1203 = vunpack.c.0.s8 %v1202
        %v1204 = vlaneseq
        %v1205 = vshrl.u32 %v1204, 7
        %v1206 = vsub.s32 %v1203, %v1205
        %v1207 = vrot.slane %v1193, %v1206
        %v1208 = vcombine.low %v1184, %v1200
        %v1209 = vcombine.high %v1184, %v1200
        %v1211 = vunpack.c.l.s4 1934713408
        %v1212 = vunpack.c.0.s8 %v1211
        %v1213 = vlaneseq
        %v1214 = vshrl.u32 %v1213, 7
        %v1215 = vsub.s32 %v1212, %v1214
        %v1216 = vrot.slane %v1208, %v1215
        %v1218 = vunpack.c.l.s4 1934713408
        %v1219 = vunpack.c.0.s8 %v1218
        %v1220 = vlaneseq
        %v1221 = vshrl.u32 %v1220, 7
        %v1222 = vsub.s32 %v1219, %v1221
        %v1223 = vrot.slane %v1209, %v1222
        %v1224 = vcombine.low %v1191, %v1207
        %v1225 = vcombine.high %v1191, %v1207
        %v1227 = vunpack.c.l.s4 1934713408
        %v1228 = vunpack.c.0.s8 %v1227
        %v1229 = vlaneseq
        %v1230 = vshrl.u32 %v1229, 7
        %v1231 = vsub.s32 %v1228, %v1230
        %v1232 = vrot.slane %v1224, %v1231
        %v1234 = vunpack.c.l.s4 1934713408
        %v1235 = vunpack.c.0.s8 %v1234
        %v1236 = vlaneseq
        %v1237 = vshrl.u32 %v1236, 7
        %v1238 = vsub.s32 %v1235, %v1237
        %v1239 = vrot.slane %v1225, %v1238
        %v1240 = vcombine.high %v1216, 0.0
        %v1241 = vcombine.high %v1223, 0.0
        %v1242 = vcombine.high %v1232, 0.0
        %v1243 = vcombine.high %v1239, 0.0
        %v1244 = vcombine.low %v1216, %v1223
        %v1246 = vunpack.c.l.s4 1983009808
        %v1247 = vunpack.c.0.s8 %v1246
        %v1248 = vlaneseq
        %v1249 = vshrl.u32 %v1248, 7
        %v1250 = vsub.s32 %v1247, %v1249
        %v1251 = vrot.slane %v1244, %v1250
        %v1252 = vcombine.low %v1240, %v1241
        %v1254 = vunpack.c.l.s4 1983009808
        %v1255 = vunpack.c.0.s8 %v1254
        %v1256 = vlaneseq
        %v1257 = vshrl.u32 %v1256, 7
        %v1258 = vsub.s32 %v1255, %v1257
        %v1259 = vrot.slane %v1252, %v1258
        %v1260 = vcombine.low %v1232, %v1239
        %v1262 = vunpack.c.l.s4 1983009808
        %v1263 = vunpack.c.0.s8 %v1262
        %v1264 = vlaneseq
        %v1265 = vshrl.u32 %v1264, 7
        %v1266 = vsub.s32 %v1263, %v1265
        %v1267 = vrot.slane %v1260, %v1266
        %v1268 = vcombine.low %v1242, %v1243
        %v1270 = vunpack.c.l.s4 1983009808
        %v1271 = vunpack.c.0.s8 %v1270
        %v1272 = vlaneseq
        %v1273 = vshrl.u32 %v1272, 7
        %v1274 = vsub.s32 %v1271, %v1273
        %v1275 = vrot.slane %v1268, %v1274
        %v1276 = vcombine.low %v1251, %v1259
        %v1277 = vcombine.high %v1251, %v1259
        %v1279 = vunpack.c.l.s4 1934713408
        %v1280 = vunpack.c.0.s8 %v1279
        %v1281 = vlaneseq
        %v1282 = vshrl.u32 %v1281, 7
        %v1283 = vsub.s32 %v1280, %v1282
        %v1284 = vrot.slane %v1276, %v1283
        %v1286 = vunpack.c.l.s4 1934713408
        %v1287 = vunpack.c.0.s8 %v1286
        %v1288 = vlaneseq
        %v1289 = vshrl.u32 %v1288, 7
        %v1290 = vsub.s32 %v1287, %v1289
        %v1291 = vrot.slane %v1277, %v1290
        %v1292 = vcombine.low %v1267, %v1275
        %v1293 = vcombine.high %v1267, %v1275
        %v1295 = vunpack.c.l.s4 1934713408
        %v1296 = vunpack.c.0.s8 %v1295
        %v1297 = vlaneseq
        %v1298 = vshrl.u32 %v1297, 7
        %v1299 = vsub.s32 %v1296, %v1298
        %v1300 = vrot.slane %v1292, %v1299
        %v1302 = vunpack.c.l.s4 1934713408
        %v1303 = vunpack.c.0.s8 %v1302
        %v1304 = vlaneseq
        %v1305 = vshrl.u32 %v1304, 7
        %v1306 = vsub.s32 %v1303, %v1305
        %v1307 = vrot.slane %v1293, %v1306
        %v1308 = vcombine.low %v1284, %v1300
        %v1309 = vcombine.high %v1284, %v1300
        %v1310 = vcombine.low %v1291, %v1307
        %v1311 = vcombine.high %v1291, %v1307
        %1313 = vrot.lane.b32.xlu0 %v1309, 8
        %v1314 = vpop.permute.xlu0 %1313
        %1317 = vrot.lane.b32.xlu0 %v1310, 16
        %v1318 = vpop.permute.xlu0 %1317
        %1321 = vrot.lane.b32.xlu0 %v1311, 24
        %v1322 = vpop.permute.xlu0 %1321
        %v1324 = vsel %vm758, %v1308, %v1314
        %vm1325 = vcmask 130048
        %v1326 = vsel %vm1325, %v1324, %v1318
        %vm1327 = vcmask 195584
        %v1328 = vsel %vm1327, %v1326, %v1322
        %v1329 = vpack.c.bf16 %v1328, %v1328
        %v1330 = vld [vmem:[#allocation7] sm:$0xf]
        %v1331 = vld [vmem:[#allocation7 + $0x4] sm:$0xf]
        %v1332 = vld [vmem:[#allocation7 + $0x8] sm:$0xf]
        %v1333 = vld [vmem:[#allocation7 + $0xc] sm:$0xf]
        %v1334 = vld [vmem:[%s3] sm:$0x1]
        %v1336 = vlaneseq
        %v1337 = vshrl.u32 %v1336, 7
        %v1338 = vsub.s32 0, %v1337
        %v1339 = vrot.slane %v1334, %v1338
        %v1345 = vunpack.c.l.b16 %v1330
        %v1346 = vunpack.c.l.b16 %v1331
        %v1347 = vunpack.c.l.b16 %v1332
        %v1348 = vunpack.c.l.b16 %v1333
        %v1349 = vpack.c.b16 %v1346, %v1345
        %v1350 = vpack.c.b16 %v1348, %v1347
        %v1354 = vsel %vm260, %v1329, 0
        %1356 = vmatprep.subr.bf16.mxu0 0
        %1357 = vmatpush1.bf16.msra.mxu0 %v1349
        %1358 = vmatprep.subr.bf16.mxu0 0
        %1359 = vmatpush1.bf16.msra.mxu0 %v1350
        %1360 = vmatprep.subr.bf16.mxu0 0
        %1361 = vmatpush1.bf16.msra.mxu0 0
        %1362 = vmatprep.subr.bf16.mxu0 0
        %1363 = vmatpush1.bf16.msra.mxu0 0
        %1364 = vmatprep.subr.bf16.mxu0 0
        %1365 = vmatpush1.bf16.msra.mxu0 0
        %1366 = vmatprep.subr.bf16.mxu0 0
        %1367 = vmatpush1.bf16.msra.mxu0 0
        %1368 = vmatprep.subr.bf16.mxu0 0
        %1369 = vmatpush1.bf16.msra.mxu0 0
        %1370 = vmatprep.subr.bf16.mxu0 0
        %1371 = vmatpush1.bf16.msra.mxu0 0
        %1372 = vmatprep.subr.bf16.mxu0 0
        %1373 = vmatpush1.bf16.msra.mxu0 0
        %1374 = vmatprep.subr.bf16.mxu0 0
        %1375 = vmatpush1.bf16.msra.mxu0 0
        %1376 = vmatprep.subr.bf16.mxu0 0
        %1377 = vmatpush1.bf16.msra.mxu0 0
        %1378 = vmatprep.subr.bf16.mxu0 0
        %1379 = vmatpush1.bf16.msra.mxu0 0
        %1380 = vmatprep.subr.bf16.mxu0 0
        %1381 = vmatpush1.bf16.msra.mxu0 0
        %1382 = vmatprep.subr.bf16.mxu0 0
        %1383 = vmatpush1.bf16.msra.mxu0 0
        %1384 = vmatprep.subr.bf16.mxu0 0
        %1385 = vmatpush1.bf16.msra.mxu0 0
        %1386 = vmatprep.subr.bf16.mxu0 0
        %1387 = vmatpush1.bf16.msra.mxu0 0
        %1388 = vmatprep.mubr.bf16.mxu0 0
        %1389 = vmatmul.mubr.bf16.gmra.mrb[0].mxu0 %v1354
        %v1390 = vpop.f32.mrb[0].mxu0
        %v1391 = vadd.f32 %v1339, %v1390
        %v1392 = vpop.f32.mrb[0].mxu0
        %v1393 = vpop.f32.mrb[0].mxu0
        %v1394 = vpop.f32.mrb[0].mxu0
        %1395 = vdwg.mxu0
        %1396 = vst.msk [vmem:[%s241] sm:$0xff] %vm260, %v1391
        %s1397 = sand.u32 %s119, 1
        %s1398 = scalar_lea.sflag [#allocation4], %s1397
        %s1399 = sand.u32 %s119, 1
        %s1400 = smul.addr %s1399, 8
        %s1401 = scalar_lea.vmem [#allocation8], %s1400
        // Predicated region
        $region49: #{tpu_custom_call.1} parent=35 // pred_check
          %p1402 = pneg %p129
        $region50: #{tpu_custom_call.1} parent=35 // pred_check_branch
          %1404 = sbr.rel (%p1402) target = $region52
        $region51: #{tpu_custom_call.1} parent=35 // pred_region
          %s1406 = ssub.s32 128, 128
          %1407 = vsyncadd %s1398, %s1406
          %s1408 = smul.addr %s22, 128
          %s1409 = scalar_lea.hbm %s4, %s1408
          %s1411 = sshll.u32 %s1401, 4
          %s1412 = int_to_ptr.vmem [resolvable:$true] %s1411
          %1414 = dma.vmem_to_hbm [thread:$0]  %s1412, 128, %s1409, %s1398
        $region52: #{tpu_custom_call.1} parent=35 // pred_fallthru
          _
      $region36: #{tpu_custom_call.1} parent=5 // pred_fallthru
        _
      %p1415 = scmp.le.s32.totalorder 2, %s17
      // Predicated region
      $region53: #{tpu_custom_call.1} parent=5 // pred_check
        %p1416 = pneg %p1415
      $region54: #{tpu_custom_call.1} parent=5 // pred_check_branch
        %1418 = sbr.rel (%p1416) target = $region56
      $region55: #{tpu_custom_call.1} parent=5 // pred_region
        %s1419 = ssub.s32 %s17, 2
        // Predicated region
        $region57: #{tpu_custom_call.1} parent=55 // pred_check
          %p1420 = pneg %p135
        $region58: #{tpu_custom_call.1} parent=55 // pred_check_branch
          %1422 = sbr.rel (%p1420) target = $region60
        $region59: #{tpu_custom_call.1} parent=55 // pred_region
          %s1423 = sand.u32 %s120, 1
          %s1424 = scalar_lea.sflag [#allocation4], %s1423
          %s1425 = sand.u32 %s120, 1
          %s1426 = smul.addr %s1425, 8
          %s1427 = scalar_lea.vmem [#allocation8], %s1426
          %1428 = dma.done %s1424, 128
        $region60: #{tpu_custom_call.1} parent=55 // pred_fallthru
          _
      $region56: #{tpu_custom_call.1} parent=5 // pred_fallthru
        _
    $region6: #{tpu_custom_call.1} parent=1 // loop_footer
      %s21 = sadd.s32 1, %s17
    $region7: #{tpu_custom_call.1} parent=1 // loop_footer_branch
      %16 = sbr.rel target = $region3
    $region8: #{tpu_custom_call.1} parent=1 // loop_exit
      _
    %1429 = vsyncpa [#allocation3], 1
    %s1430 = scalar_lea.sflag [#allocation3], 1
    %1431 = vsyncpa %s1430, 1
    %1432 = vsyncpa [#allocation6], 1
    %1433 = vsyncpa [#allocation4], 1
    %s1434 = scalar_lea.sflag [#allocation4], 1
    %1435 = vsyncpa %s1434, 1

</llo_original>
